<compile_context>
chip_gen: v7x
topology: tpu7x:2x2x1
jax: 0.10.0
libtpu: 0.0.40
codegen_flags: <defaults>
</compile_context>

<pallas_src>
import jax
import jax.numpy as jnp
from jax.experimental import pallas as pl
from jax.experimental.pallas import tpu as pltpu

GN_EPS = 1e-5   # GraphNorm eps
PAD = 128       # lane-dense padded feature width


# ----------------------------------------------------------------------------
# Fused kernel: [GINConv(MLP) -> GraphNorm -> ReLU] x L -> mean-pool -> MLP
# One grid step == one independent graph-batch (leading batch dim squeezed).
# ----------------------------------------------------------------------------
def gin_fused_kernel(a_ref, x0_ref, ss_ref, st_ref,
                     w1s_ref, b1s_ref, w2s_ref, b2s_ref,
                     gam_ref, bet_ref, ms_ref,
                     w3_ref, b3_ref, w4_ref, b4_ref, o_ref):
    num_layers = w1s_ref.shape[0]
    num_graphs = ss_ref.shape[0]

    a = a_ref[...]        # (N, N) bf16, A + I  (GINConv eps = 0)
    ss = ss_ref[...]      # (G, N) f32, S with 1/|graph| folded in
    st = st_ref[...]      # (N, G) f32, 0/1 selector columns (pre-transposed S)
    x = x0_ref[...]       # (N, P) f32, zero-padded node features

    for l in range(num_layers):               # static unroll (L small)
        # --- GINConv aggregation + MLP (bf16 MXU operands, f32 accumulation) ---
        agg = jnp.dot(a, x.astype(jnp.bfloat16),
                      preferred_element_type=jnp.float32)                  # (N, P)
        h = jnp.dot(agg.astype(jnp.bfloat16), w1s_ref[l],
                    preferred_element_type=jnp.float32) + b1s_ref[l]
        h = jnp.maximum(h, 0.0)
        h = jnp.dot(h.astype(jnp.bfloat16), w2s_ref[l],
                    preferred_element_type=jnp.float32) + b2s_ref[l]       # (N, P)

        # --- GraphNorm (f32 stats): one MXU matmul + VPU broadcast ---
        ms = ms_ref[l]                                                     # (1, P)
        # 256-lane RHS fills the v6e/v7x MXU; on v5e this could be two 128-lane
        # dots, but the concat copy is negligible at this size.
        stats_g = jnp.dot(ss, jnp.concatenate([h, h * h], axis=-1),
                          preferred_element_type=jnp.float32)              # (G, 2P)
        # graph -> node broadcast via unrolled VPU FMAs (st is a 0/1 selector;
        # avoids a K=G MXU matmul and the second lane-concat)
        stats_n = st[:, 0:1] * stats_g[0:1, :]
        for gi in range(1, num_graphs):
            stats_n = stats_n + st[:, gi:gi + 1] * stats_g[gi:gi + 1, :]   # (N, 2P)
        mean_n = stats_n[:, :PAD]
        ex2_n = stats_n[:, PAD:]
        # var of (h - ms*mean) = E[h^2] - (2*ms - ms^2) * mean^2  (exact rewrite)
        var_n = ex2_n - (2.0 * ms - ms * ms) * (mean_n * mean_n)
        centered = h - ms * mean_n
        normed = gam_ref[l] * centered * jax.lax.rsqrt(var_n + GN_EPS) + bet_ref[l]

        # ReLU; dropout is identity in eval mode
        x = jnp.maximum(normed, 0.0)

    # --- global_mean_pool (S_scaled carries 1/|graph|) + final MLP ---
    pooled = jnp.dot(ss, x, preferred_element_type=jnp.float32)            # (G, P)
    h3 = jnp.dot(pooled.astype(jnp.bfloat16), w3_ref[...],
                 preferred_element_type=jnp.float32) + b3_ref[...]
    h3 = jnp.maximum(h3, 0.0)
    o_ref[...] = jnp.dot(h3.astype(jnp.bfloat16), w4_ref[...],
                         preferred_element_type=jnp.float32) + b4_ref[...]  # (G, P)


# ----------------------------------------------------------------------------
# One-time host-side weight padding / stacking (hoisted out of the call path)
# ----------------------------------------------------------------------------
def _pad2(arr, rows, cols):
    out = jnp.zeros((rows, cols), arr.dtype)
    return out.at[:arr.shape[0], :arr.shape[1]].set(arr)


def prepare_params(params):
    def pad_w(w):
        return _pad2(w.astype(jnp.float32), PAD, PAD).astype(jnp.bfloat16)

    def pad_v(v):
        return _pad2(v.reshape(1, -1).astype(jnp.float32), 1, PAD)

    layers = params["layers"]
    return dict(
        w1s=jnp.stack([pad_w(l["w1"]) for l in layers]),      # (L, P, P) bf16
        b1s=jnp.stack([pad_v(l["b1"]) for l in layers]),      # (L, 1, P) f32
        w2s=jnp.stack([pad_w(l["w2"]) for l in layers]),
        b2s=jnp.stack([pad_v(l["b2"]) for l in layers]),
        gam=jnp.stack([pad_v(l["gamma"]) for l in layers]),
        bet=jnp.stack([pad_v(l["beta"]) for l in layers]),
        ms=jnp.stack([pad_v(l["mean_scale"]) for l in layers]),
        w3=pad_w(params["w3"]), b3=pad_v(params["b3"]),
        w4=pad_w(params["w4"]), b4=pad_v(params["b4"]),
    )


# ----------------------------------------------------------------------------
# Builder: returns a jitted steady-state forward over B independent graph
# batches.  forward(x, A, S, counts): x (B,N,Cin), A (B,N,N), S (B,G,N),
# counts (B,G,1) -> logits (B, G, num_classes).
# ----------------------------------------------------------------------------
def build_gin_forward(params):
    prepped = prepare_params(params)            # one-time, captured as constants
    ncls = params["w4"].shape[1]
    num_layers = len(params["layers"])

    @jax.jit
    def forward(x, a, s, counts):
        bsz, n, c_in = x.shape
        g = s.shape[1]

        # Light per-call folds; fused by XLA under jit (no eager dispatches).
        a_pi = (a + jnp.eye(n, dtype=a.dtype)).astype(jnp.bfloat16)   # (A+I)x == (1+eps)x + sum_j x_j, eps=0
        inv_c = jnp.where(counts > 0, 1.0 / counts, 0.0)              # guard empty graphs
        ss = (s * inv_c).astype(jnp.float32)                          # (B, G, N)
        st = jnp.swapaxes(s, 1, 2).astype(jnp.float32)                # (B, N, G)
        x0 = jnp.pad(x.astype(jnp.float32),
                     ((0, 0), (0, 0), (0, PAD - c_in)))               # (B, N, P)

        p = prepped
        weights = (p["w1s"], p["b1s"], p["w2s"], p["b2s"],
                   p["gam"], p["bet"], p["ms"],
                   p["w3"], p["b3"], p["w4"], p["b4"])

        def whole(arr):   # full-array block, same index every grid step -> fetched once
            return pl.BlockSpec(arr.shape, lambda b: (0,) * arr.ndim)

        in_specs = [
            pl.BlockSpec((None, n, n), lambda b: (b, 0, 0)),      # A + I
            pl.BlockSpec((None, n, PAD), lambda b: (b, 0, 0)),    # x0
            pl.BlockSpec((None, g, n), lambda b: (b, 0, 0)),      # S_scaled
            pl.BlockSpec((None, n, g), lambda b: (b, 0, 0)),      # S^T
        ] + [whole(w) for w in weights]

        # Advisory cost estimate for XLA scheduling.
        flops_per_b = (num_layers * (2 * n * n * PAD              # (A+I) @ x
                                     + 2 * (2 * n * PAD * PAD)    # two Linear layers
                                     + 2 * g * n * 2 * PAD        # GraphNorm stats matmul
                                     + 2 * n * g * 2 * PAD)       # VPU broadcast FMAs
                       + 2 * g * n * PAD                          # mean pool
                       + 2 * (2 * g * PAD * PAD))                 # final MLP
        all_inputs = (a_pi, x0, ss, st) + weights
        bytes_acc = (sum(int(t.size) * t.dtype.itemsize for t in all_inputs)
                     + bsz * g * PAD * 4)

        out_pad = pl.pallas_call(
            gin_fused_kernel,
            grid=(bsz,),
            out_shape=jax.ShapeDtypeStruct((bsz, g, PAD), jnp.float32),
            in_specs=in_specs,
            out_specs=pl.BlockSpec((None, g, PAD), lambda b: (b, 0, 0)),
            compiler_params=pltpu.CompilerParams(
                dimension_semantics=("parallel",),            # v7x: 2 TCs split batches
                vmem_limit_bytes=32 * 1024 * 1024),
            cost_estimate=pl.CostEstimate(flops=bsz * flops_per_b,
                                          transcendentals=bsz * num_layers * n * PAD,
                                          bytes_accessed=bytes_acc),
        )(*all_inputs)

        return out_pad[:, :, :ncls]

    return forward


# ----------------------------------------------------------------------------
# Pure-JAX reference (single graph-batch): original two-pass GraphNorm, same
# bf16-operand / f32-accum matmul scheme as the kernel, so the check also
# validates the fused-variance rewrite, the VPU broadcast and the host folds.
# ----------------------------------------------------------------------------
def gin_forward_ref(x, a, s, counts, params):
    n = x.shape[0]
    a1 = (a + jnp.eye(n, dtype=a.dtype)).astype(jnp.bfloat16)
    inv_c = jnp.where(counts > 0, 1.0 / counts, 0.0)
    ss = s * inv_c
    st = s.T

    def bdot(p, q):
        return jnp.dot(p.astype(jnp.bfloat16), q.astype(jnp.bfloat16),
                       preferred_element_type=jnp.float32)

    for layer in params["layers"]:
        agg = bdot(a1, x)
        h = jnp.maximum(bdot(agg, layer["w1"]) + layer["b1"], 0.0)
        h = bdot(h, layer["w2"]) + layer["b2"]
        mean_n = st @ (ss @ h)
        c = h - layer["mean_scale"] * mean_n
        var_n = st @ (ss @ (c * c))
        x = jnp.maximum(layer["gamma"] * c * jax.lax.rsqrt(var_n + GN_EPS)
                        + layer["beta"], 0.0)
    pooled = ss @ x
    h = jnp.maximum(bdot(pooled, params["w3"]) + params["b3"], 0.0)
    return bdot(h, params["w4"]) + params["b4"]


if __name__ == "__main__":
    # Small problem sizes consistent with the module's forward.
    B = 2                 # independent graph-batches (grid axis)
    G = 2                 # graphs per batch
    PER_G = 8             # nodes per graph
    N_NODES = G * PER_G   # 16 nodes per batch
    IN_C = 8              # in_channels
    HID = 32              # hidden_channels
    NUM_CLASSES = 3       # num_classes
    NUM_LAYERS = 2

    key = jax.random.PRNGKey(0)

    # --- graph structure: batch 0 = two 8-node rings, batch 1 = two 8-node paths
    def build_graph_batch(ring):
        src, dst, batch_vec = [], [], []
        for gi in range(G):
            base = gi * PER_G
            n_edges = PER_G if ring else PER_G - 1
            for i in range(n_edges):
                u = base + i
                v = base + (i + 1) % PER_G
                src += [u, v]
                dst += [v, u]
            batch_vec += [gi] * PER_G
        src = jnp.array(src, jnp.int32)
        dst = jnp.array(dst, jnp.int32)
        batch = jnp.array(batch_vec, jnp.int32)
        # dense adjacency: A[dst, src] = 1 (message flows source -> target)
        a = jnp.zeros((N_NODES, N_NODES), jnp.float32).at[dst, src].add(1.0)
        # one-hot graph assignment S[g, n] and per-graph node counts
        s = (batch[None, :] == jnp.arange(G)[:, None]).astype(jnp.float32)
        c = s.sum(axis=1, keepdims=True)
        return a, s, c

    a0, s0, c0 = build_graph_batch(ring=True)
    a1, s1, c1 = build_graph_batch(ring=False)
    A = jnp.stack([a0, a1])            # (B, N, N)
    S = jnp.stack([s0, s1])            # (B, G, N)
    counts = jnp.stack([c0, c1])       # (B, G, 1)

    # --- node features -------------------------------------------------------
    key, kx = jax.random.split(key)
    x = jax.random.normal(kx, (B, N_NODES, IN_C), jnp.float32)

    # --- deterministic parameter init ---------------------------------------
    def lin_init(k, fan_in, fan_out):
        kw, kb = jax.random.split(k)
        bound = 1.0 / jnp.sqrt(fan_in)
        w = jax.random.uniform(kw, (fan_in, fan_out), jnp.float32, -bound, bound)
        b = jax.random.uniform(kb, (1, fan_out), jnp.float32, -bound, bound)
        return w, b

    layers = []
    c_in = IN_C
    for _ in range(NUM_LAYERS):
        key, k1, k2 = jax.random.split(key, 3)
        w1, b1 = lin_init(k1, c_in, HID)
        w2, b2 = lin_init(k2, HID, HID)
        layers.append(dict(
            w1=w1, b1=b1, w2=w2, b2=b2,
            gamma=jnp.ones((1, HID), jnp.float32),       # GraphNorm weight
            beta=jnp.zeros((1, HID), jnp.float32),       # GraphNorm bias
            mean_scale=jnp.ones((1, HID), jnp.float32),  # GraphNorm mean_scale
        ))
        c_in = HID

    key, k3, k4 = jax.random.split(key, 3)
    w3, b3 = lin_init(k3, HID, HID)
    w4, b4 = lin_init(k4, HID, NUM_CLASSES)
    params = dict(layers=layers, w3=w3, b3=b3, w4=w4, b4=b4)

    # --- build once (one-time weight padding/stacking + jit), run, check -----
    gin_forward = build_gin_forward(params)
    out = jax.block_until_ready(gin_forward(x, A, S, counts))

    ref = jnp.stack([gin_forward_ref(x[b], A[b], S[b], counts[b], params)
                     for b in range(B)])
    assert out.shape == (B, G, NUM_CLASSES), out.shape
    assert jnp.allclose(out, ref, atol=1e-3, rtol=1e-3), (out, ref)

    print("KERNEL_OK")
</pallas_src>

<mosaic_0001>
module attributes {stable_mosaic.version = 11 : i64} {
  func.func @gin_fused_kernel(%arg0: i32, %arg1: memref<1x16x16xbf16, #tpu.memory_space<vmem>>, %arg2: memref<1x16x128xf32, #tpu.memory_space<vmem>>, %arg3: memref<1x2x16xf32, #tpu.memory_space<vmem>>, %arg4: memref<1x16x2xf32, #tpu.memory_space<vmem>>, %arg5: memref<2x128x128xbf16, #tpu.memory_space<vmem>>, %arg6: memref<2x1x128xf32, #tpu.memory_space<vmem>>, %arg7: memref<2x128x128xbf16, #tpu.memory_space<vmem>>, %arg8: memref<2x1x128xf32, #tpu.memory_space<vmem>>, %arg9: memref<2x1x128xf32, #tpu.memory_space<vmem>>, %arg10: memref<2x1x128xf32, #tpu.memory_space<vmem>>, %arg11: memref<2x1x128xf32, #tpu.memory_space<vmem>>, %arg12: memref<128x128xbf16, #tpu.memory_space<vmem>>, %arg13: memref<1x128xf32, #tpu.memory_space<vmem>>, %arg14: memref<128x128xbf16, #tpu.memory_space<vmem>>, %arg15: memref<1x128xf32, #tpu.memory_space<vmem>>, %arg16: memref<1x2x128xf32, #tpu.memory_space<vmem>>) attributes {dimension_semantics = [#tpu.dimension_semantics<parallel>], iteration_bounds = array<i64: 2>, scalar_prefetch = 0 : i64, scratch_operands = 0 : i64, tpu.core_type = #tpu.core_type<tc>, window_params = [{transform_indices = @transform_0, window_bounds = array<i64: 1, 16, 16>}, {transform_indices = @transform_1, window_bounds = array<i64: 1, 16, 128>}, {transform_indices = @transform_2, window_bounds = array<i64: 1, 2, 16>}, {transform_indices = @transform_3, window_bounds = array<i64: 1, 16, 2>}, {pipeline_mode = #tpu.pipeline_mode<synchronous>, transform_indices = @transform_4, window_bounds = array<i64: 2, 128, 128>}, {pipeline_mode = #tpu.pipeline_mode<synchronous>, transform_indices = @transform_5, window_bounds = array<i64: 2, 1, 128>}, {pipeline_mode = #tpu.pipeline_mode<synchronous>, transform_indices = @transform_6, window_bounds = array<i64: 2, 128, 128>}, {pipeline_mode = #tpu.pipeline_mode<synchronous>, transform_indices = @transform_7, window_bounds = array<i64: 2, 1, 128>}, {pipeline_mode = #tpu.pipeline_mode<synchronous>, transform_indices = @transform_8, window_bounds = array<i64: 2, 1, 128>}, {pipeline_mode = #tpu.pipeline_mode<synchronous>, transform_indices = @transform_9, window_bounds = array<i64: 2, 1, 128>}, {pipeline_mode = #tpu.pipeline_mode<synchronous>, transform_indices = @transform_10, window_bounds = array<i64: 2, 1, 128>}, {pipeline_mode = #tpu.pipeline_mode<synchronous>, transform_indices = @transform_11, window_bounds = array<i64: 128, 128>}, {pipeline_mode = #tpu.pipeline_mode<synchronous>, transform_indices = @transform_12, window_bounds = array<i64: 1, 128>}, {pipeline_mode = #tpu.pipeline_mode<synchronous>, transform_indices = @transform_13, window_bounds = array<i64: 128, 128>}, {pipeline_mode = #tpu.pipeline_mode<synchronous>, transform_indices = @transform_14, window_bounds = array<i64: 1, 128>}, {transform_indices = @transform_15, window_bounds = array<i64: 1, 2, 128>}]} {
    %c0 = arith.constant 0 : index
    %c0_0 = arith.constant 0 : index
    %c0_1 = arith.constant 0 : index
    %0 = vector.load %arg1[%c0, %c0_0, %c0_1] : memref<1x16x16xbf16, #tpu.memory_space<vmem>>, vector<1x16x16xbf16>
    %1 = vector.shape_cast %0 : vector<1x16x16xbf16> to vector<16x16xbf16>
    %c0_2 = arith.constant 0 : index
    %c0_3 = arith.constant 0 : index
    %c0_4 = arith.constant 0 : index
    %2 = vector.load %arg3[%c0_2, %c0_3, %c0_4] : memref<1x2x16xf32, #tpu.memory_space<vmem>>, vector<1x2x16xf32>
    %3 = vector.shape_cast %2 : vector<1x2x16xf32> to vector<2x16xf32>
    %c0_5 = arith.constant 0 : index
    %c0_6 = arith.constant 0 : index
    %c0_7 = arith.constant 0 : index
    %4 = vector.load %arg4[%c0_5, %c0_6, %c0_7] : memref<1x16x2xf32, #tpu.memory_space<vmem>>, vector<1x16x2xf32>
    %5 = vector.shape_cast %4 : vector<1x16x2xf32> to vector<16x2xf32>
    %c0_8 = arith.constant 0 : index
    %c0_9 = arith.constant 0 : index
    %c0_10 = arith.constant 0 : index
    %6 = vector.load %arg2[%c0_8, %c0_9, %c0_10] : memref<1x16x128xf32, #tpu.memory_space<vmem>>, vector<1x16x128xf32>
    %7 = vector.shape_cast %6 : vector<1x16x128xf32> to vector<16x128xf32>
    %8 = arith.truncf %7 : vector<16x128xf32> to vector<16x128xbf16>
    %cst = arith.constant dense<0.000000e+00> : vector<16x128xf32>
    %9 = tpu.matmul %1, %8, %cst {dimension_numbers = #tpu.dot_dimension_numbers<[1], [0], [0], [1], [0, 0, 1, 1], [], []>} : vector<16x16xbf16>, vector<16x128xbf16>, vector<16x128xf32> -> vector<16x128xf32>
    %10 = arith.truncf %9 : vector<16x128xf32> to vector<16x128xbf16>
    %c0_11 = arith.constant 0 : index
    %c0_12 = arith.constant 0 : index
    %c0_13 = arith.constant 0 : index
    %11 = vector.load %arg5[%c0_11, %c0_12, %c0_13] : memref<2x128x128xbf16, #tpu.memory_space<vmem>>, vector<1x128x128xbf16>
    %12 = vector.shape_cast %11 : vector<1x128x128xbf16> to vector<128x128xbf16>
    %cst_14 = arith.constant dense<0.000000e+00> : vector<16x128xf32>
    %13 = tpu.matmul %10, %12, %cst_14 {dimension_numbers = #tpu.dot_dimension_numbers<[1], [0], [0], [1], [0, 0, 1, 1], [], []>} : vector<16x128xbf16>, vector<128x128xbf16>, vector<16x128xf32> -> vector<16x128xf32>
    %c0_15 = arith.constant 0 : index
    %c0_16 = arith.constant 0 : index
    %c0_17 = arith.constant 0 : index
    %14 = vector.load %arg6[%c0_15, %c0_16, %c0_17] : memref<2x1x128xf32, #tpu.memory_space<vmem>>, vector<1x1x128xf32>
    %15 = vector.shape_cast %14 : vector<1x1x128xf32> to vector<1x128xf32>
    %16 = vector.broadcast %15 : vector<1x128xf32> to vector<16x128xf32>
    %17 = arith.addf %13, %16 : vector<16x128xf32>
    %cst_18 = arith.constant 0.000000e+00 : f32
    %18 = vector.broadcast %cst_18 : f32 to vector<16x128xf32>
    %19 = arith.maximumf %17, %18 : vector<16x128xf32>
    %20 = arith.truncf %19 : vector<16x128xf32> to vector<16x128xbf16>
    %c0_19 = arith.constant 0 : index
    %c0_20 = arith.constant 0 : index
    %c0_21 = arith.constant 0 : index
    %21 = vector.load %arg7[%c0_19, %c0_20, %c0_21] : memref<2x128x128xbf16, #tpu.memory_space<vmem>>, vector<1x128x128xbf16>
    %22 = vector.shape_cast %21 : vector<1x128x128xbf16> to vector<128x128xbf16>
    %cst_22 = arith.constant dense<0.000000e+00> : vector<16x128xf32>
    %23 = tpu.matmul %20, %22, %cst_22 {dimension_numbers = #tpu.dot_dimension_numbers<[1], [0], [0], [1], [0, 0, 1, 1], [], []>} : vector<16x128xbf16>, vector<128x128xbf16>, vector<16x128xf32> -> vector<16x128xf32>
    %c0_23 = arith.constant 0 : index
    %c0_24 = arith.constant 0 : index
    %c0_25 = arith.constant 0 : index
    %24 = vector.load %arg8[%c0_23, %c0_24, %c0_25] : memref<2x1x128xf32, #tpu.memory_space<vmem>>, vector<1x1x128xf32>
    %25 = vector.shape_cast %24 : vector<1x1x128xf32> to vector<1x128xf32>
    %26 = vector.broadcast %25 : vector<1x128xf32> to vector<16x128xf32>
    %27 = arith.addf %23, %26 : vector<16x128xf32>
    %c0_26 = arith.constant 0 : index
    %c0_27 = arith.constant 0 : index
    %c0_28 = arith.constant 0 : index
    %28 = vector.load %arg11[%c0_26, %c0_27, %c0_28] : memref<2x1x128xf32, #tpu.memory_space<vmem>>, vector<1x1x128xf32>
    %29 = vector.shape_cast %28 : vector<1x1x128xf32> to vector<1x128xf32>
    %30 = arith.mulf %27, %27 : vector<16x128xf32>
    %31 = tpu.concatenate %27, %30 in 1 : vector<16x128xf32>, vector<16x128xf32> -> vector<16x256xf32>
    %cst_29 = arith.constant dense<0.000000e+00> : vector<2x256xf32>
    %32 = tpu.matmul %3, %31, %cst_29 {dimension_numbers = #tpu.dot_dimension_numbers<[1], [0], [0], [1], [0, 0, 1, 1], [], []>} : vector<2x16xf32>, vector<16x256xf32>, vector<2x256xf32> -> vector<2x256xf32>
    %33 = vector.extract_strided_slice %5 {offsets = [0, 0], sizes = [16, 1], strides = [1, 1]} : vector<16x2xf32> to vector<16x1xf32>
    %34 = vector.extract_strided_slice %32 {offsets = [0, 0], sizes = [1, 256], strides = [1, 1]} : vector<2x256xf32> to vector<1x256xf32>
    %35 = vector.broadcast %33 : vector<16x1xf32> to vector<16x256xf32>
    %36 = vector.broadcast %34 : vector<1x256xf32> to vector<16x256xf32>
    %37 = arith.mulf %35, %36 : vector<16x256xf32>
    %38 = vector.extract_strided_slice %5 {offsets = [0, 1], sizes = [16, 1], strides = [1, 1]} : vector<16x2xf32> to vector<16x1xf32>
    %39 = vector.extract_strided_slice %32 {offsets = [1, 0], sizes = [1, 256], strides = [1, 1]} : vector<2x256xf32> to vector<1x256xf32>
    %40 = vector.broadcast %38 : vector<16x1xf32> to vector<16x256xf32>
    %41 = vector.broadcast %39 : vector<1x256xf32> to vector<16x256xf32>
    %42 = arith.mulf %40, %41 : vector<16x256xf32>
    %43 = arith.addf %37, %42 : vector<16x256xf32>
    %44 = vector.extract_strided_slice %43 {offsets = [0, 0], sizes = [16, 128], strides = [1, 1]} : vector<16x256xf32> to vector<16x128xf32>
    %45 = vector.extract_strided_slice %43 {offsets = [0, 128], sizes = [16, 128], strides = [1, 1]} : vector<16x256xf32> to vector<16x128xf32>
    %cst_30 = arith.constant 2.000000e+00 : f32
    %46 = vector.broadcast %cst_30 : f32 to vector<1x128xf32>
    %47 = arith.mulf %46, %29 : vector<1x128xf32>
    %48 = arith.mulf %29, %29 : vector<1x128xf32>
    %49 = arith.subf %47, %48 : vector<1x128xf32>
    %50 = arith.mulf %44, %44 : vector<16x128xf32>
    %51 = vector.broadcast %49 : vector<1x128xf32> to vector<16x128xf32>
    %52 = arith.mulf %51, %50 : vector<16x128xf32>
    %53 = arith.subf %45, %52 : vector<16x128xf32>
    %54 = vector.broadcast %29 : vector<1x128xf32> to vector<16x128xf32>
    %55 = arith.mulf %54, %44 : vector<16x128xf32>
    %56 = arith.subf %27, %55 : vector<16x128xf32>
    %c0_31 = arith.constant 0 : index
    %c0_32 = arith.constant 0 : index
    %c0_33 = arith.constant 0 : index
    %57 = vector.load %arg9[%c0_31, %c0_32, %c0_33] : memref<2x1x128xf32, #tpu.memory_space<vmem>>, vector<1x1x128xf32>
    %58 = vector.shape_cast %57 : vector<1x1x128xf32> to vector<1x128xf32>
    %59 = vector.broadcast %58 : vector<1x128xf32> to vector<16x128xf32>
    %60 = arith.mulf %59, %56 : vector<16x128xf32>
    %cst_34 = arith.constant 9.99999974E-6 : f32
    %61 = vector.broadcast %cst_34 : f32 to vector<16x128xf32>
    %62 = arith.addf %53, %61 : vector<16x128xf32>
    %63 = math.rsqrt %62 : vector<16x128xf32>
    %64 = arith.mulf %60, %63 : vector<16x128xf32>
    %c0_35 = arith.constant 0 : index
    %c0_36 = arith.constant 0 : index
    %c0_37 = arith.constant 0 : index
    %65 = vector.load %arg10[%c0_35, %c0_36, %c0_37] : memref<2x1x128xf32, #tpu.memory_space<vmem>>, vector<1x1x128xf32>
    %66 = vector.shape_cast %65 : vector<1x1x128xf32> to vector<1x128xf32>
    %67 = vector.broadcast %66 : vector<1x128xf32> to vector<16x128xf32>
    %68 = arith.addf %64, %67 : vector<16x128xf32>
    %cst_38 = arith.constant 0.000000e+00 : f32
    %69 = vector.broadcast %cst_38 : f32 to vector<16x128xf32>
    %70 = arith.maximumf %68, %69 : vector<16x128xf32>
    %71 = arith.truncf %70 : vector<16x128xf32> to vector<16x128xbf16>
    %cst_39 = arith.constant dense<0.000000e+00> : vector<16x128xf32>
    %72 = tpu.matmul %1, %71, %cst_39 {dimension_numbers = #tpu.dot_dimension_numbers<[1], [0], [0], [1], [0, 0, 1, 1], [], []>} : vector<16x16xbf16>, vector<16x128xbf16>, vector<16x128xf32> -> vector<16x128xf32>
    %73 = arith.truncf %72 : vector<16x128xf32> to vector<16x128xbf16>
    %c1 = arith.constant 1 : index
    %c0_40 = arith.constant 0 : index
    %c0_41 = arith.constant 0 : index
    %74 = vector.load %arg5[%c1, %c0_40, %c0_41] : memref<2x128x128xbf16, #tpu.memory_space<vmem>>, vector<1x128x128xbf16>
    %75 = vector.shape_cast %74 : vector<1x128x128xbf16> to vector<128x128xbf16>
    %cst_42 = arith.constant dense<0.000000e+00> : vector<16x128xf32>
    %76 = tpu.matmul %73, %75, %cst_42 {dimension_numbers = #tpu.dot_dimension_numbers<[1], [0], [0], [1], [0, 0, 1, 1], [], []>} : vector<16x128xbf16>, vector<128x128xbf16>, vector<16x128xf32> -> vector<16x128xf32>
    %c1_43 = arith.constant 1 : index
    %c0_44 = arith.constant 0 : index
    %c0_45 = arith.constant 0 : index
    %77 = vector.load %arg6[%c1_43, %c0_44, %c0_45] : memref<2x1x128xf32, #tpu.memory_space<vmem>>, vector<1x1x128xf32>
    %78 = vector.shape_cast %77 : vector<1x1x128xf32> to vector<1x128xf32>
    %79 = vector.broadcast %78 : vector<1x128xf32> to vector<16x128xf32>
    %80 = arith.addf %76, %79 : vector<16x128xf32>
    %cst_46 = arith.constant 0.000000e+00 : f32
    %81 = vector.broadcast %cst_46 : f32 to vector<16x128xf32>
    %82 = arith.maximumf %80, %81 : vector<16x128xf32>
    %83 = arith.truncf %82 : vector<16x128xf32> to vector<16x128xbf16>
    %c1_47 = arith.constant 1 : index
    %c0_48 = arith.constant 0 : index
    %c0_49 = arith.constant 0 : index
    %84 = vector.load %arg7[%c1_47, %c0_48, %c0_49] : memref<2x128x128xbf16, #tpu.memory_space<vmem>>, vector<1x128x128xbf16>
    %85 = vector.shape_cast %84 : vector<1x128x128xbf16> to vector<128x128xbf16>
    %cst_50 = arith.constant dense<0.000000e+00> : vector<16x128xf32>
    %86 = tpu.matmul %83, %85, %cst_50 {dimension_numbers = #tpu.dot_dimension_numbers<[1], [0], [0], [1], [0, 0, 1, 1], [], []>} : vector<16x128xbf16>, vector<128x128xbf16>, vector<16x128xf32> -> vector<16x128xf32>
    %c1_51 = arith.constant 1 : index
    %c0_52 = arith.constant 0 : index
    %c0_53 = arith.constant 0 : index
    %87 = vector.load %arg8[%c1_51, %c0_52, %c0_53] : memref<2x1x128xf32, #tpu.memory_space<vmem>>, vector<1x1x128xf32>
    %88 = vector.shape_cast %87 : vector<1x1x128xf32> to vector<1x128xf32>
    %89 = vector.broadcast %88 : vector<1x128xf32> to vector<16x128xf32>
    %90 = arith.addf %86, %89 : vector<16x128xf32>
    %c1_54 = arith.constant 1 : index
    %c0_55 = arith.constant 0 : index
    %c0_56 = arith.constant 0 : index
    %91 = vector.load %arg11[%c1_54, %c0_55, %c0_56] : memref<2x1x128xf32, #tpu.memory_space<vmem>>, vector<1x1x128xf32>
    %92 = vector.shape_cast %91 : vector<1x1x128xf32> to vector<1x128xf32>
    %93 = arith.mulf %90, %90 : vector<16x128xf32>
    %94 = tpu.concatenate %90, %93 in 1 : vector<16x128xf32>, vector<16x128xf32> -> vector<16x256xf32>
    %cst_57 = arith.constant dense<0.000000e+00> : vector<2x256xf32>
    %95 = tpu.matmul %3, %94, %cst_57 {dimension_numbers = #tpu.dot_dimension_numbers<[1], [0], [0], [1], [0, 0, 1, 1], [], []>} : vector<2x16xf32>, vector<16x256xf32>, vector<2x256xf32> -> vector<2x256xf32>
    %96 = vector.extract_strided_slice %5 {offsets = [0, 0], sizes = [16, 1], strides = [1, 1]} : vector<16x2xf32> to vector<16x1xf32>
    %97 = vector.extract_strided_slice %95 {offsets = [0, 0], sizes = [1, 256], strides = [1, 1]} : vector<2x256xf32> to vector<1x256xf32>
    %98 = vector.broadcast %96 : vector<16x1xf32> to vector<16x256xf32>
    %99 = vector.broadcast %97 : vector<1x256xf32> to vector<16x256xf32>
    %100 = arith.mulf %98, %99 : vector<16x256xf32>
    %101 = vector.extract_strided_slice %5 {offsets = [0, 1], sizes = [16, 1], strides = [1, 1]} : vector<16x2xf32> to vector<16x1xf32>
    %102 = vector.extract_strided_slice %95 {offsets = [1, 0], sizes = [1, 256], strides = [1, 1]} : vector<2x256xf32> to vector<1x256xf32>
    %103 = vector.broadcast %101 : vector<16x1xf32> to vector<16x256xf32>
    %104 = vector.broadcast %102 : vector<1x256xf32> to vector<16x256xf32>
    %105 = arith.mulf %103, %104 : vector<16x256xf32>
    %106 = arith.addf %100, %105 : vector<16x256xf32>
    %107 = vector.extract_strided_slice %106 {offsets = [0, 0], sizes = [16, 128], strides = [1, 1]} : vector<16x256xf32> to vector<16x128xf32>
    %108 = vector.extract_strided_slice %106 {offsets = [0, 128], sizes = [16, 128], strides = [1, 1]} : vector<16x256xf32> to vector<16x128xf32>
    %cst_58 = arith.constant 2.000000e+00 : f32
    %109 = vector.broadcast %cst_58 : f32 to vector<1x128xf32>
    %110 = arith.mulf %109, %92 : vector<1x128xf32>
    %111 = arith.mulf %92, %92 : vector<1x128xf32>
    %112 = arith.subf %110, %111 : vector<1x128xf32>
    %113 = arith.mulf %107, %107 : vector<16x128xf32>
    %114 = vector.broadcast %112 : vector<1x128xf32> to vector<16x128xf32>
    %115 = arith.mulf %114, %113 : vector<16x128xf32>
    %116 = arith.subf %108, %115 : vector<16x128xf32>
    %117 = vector.broadcast %92 : vector<1x128xf32> to vector<16x128xf32>
    %118 = arith.mulf %117, %107 : vector<16x128xf32>
    %119 = arith.subf %90, %118 : vector<16x128xf32>
    %c1_59 = arith.constant 1 : index
    %c0_60 = arith.constant 0 : index
    %c0_61 = arith.constant 0 : index
    %120 = vector.load %arg9[%c1_59, %c0_60, %c0_61] : memref<2x1x128xf32, #tpu.memory_space<vmem>>, vector<1x1x128xf32>
    %121 = vector.shape_cast %120 : vector<1x1x128xf32> to vector<1x128xf32>
    %122 = vector.broadcast %121 : vector<1x128xf32> to vector<16x128xf32>
    %123 = arith.mulf %122, %119 : vector<16x128xf32>
    %cst_62 = arith.constant 9.99999974E-6 : f32
    %124 = vector.broadcast %cst_62 : f32 to vector<16x128xf32>
    %125 = arith.addf %116, %124 : vector<16x128xf32>
    %126 = math.rsqrt %125 : vector<16x128xf32>
    %127 = arith.mulf %123, %126 : vector<16x128xf32>
    %c1_63 = arith.constant 1 : index
    %c0_64 = arith.constant 0 : index
    %c0_65 = arith.constant 0 : index
    %128 = vector.load %arg10[%c1_63, %c0_64, %c0_65] : memref<2x1x128xf32, #tpu.memory_space<vmem>>, vector<1x1x128xf32>
    %129 = vector.shape_cast %128 : vector<1x1x128xf32> to vector<1x128xf32>
    %130 = vector.broadcast %129 : vector<1x128xf32> to vector<16x128xf32>
    %131 = arith.addf %127, %130 : vector<16x128xf32>
    %cst_66 = arith.constant 0.000000e+00 : f32
    %132 = vector.broadcast %cst_66 : f32 to vector<16x128xf32>
    %133 = arith.maximumf %131, %132 : vector<16x128xf32>
    %cst_67 = arith.constant dense<0.000000e+00> : vector<2x128xf32>
    %134 = tpu.matmul %3, %133, %cst_67 {dimension_numbers = #tpu.dot_dimension_numbers<[1], [0], [0], [1], [0, 0, 1, 1], [], []>} : vector<2x16xf32>, vector<16x128xf32>, vector<2x128xf32> -> vector<2x128xf32>
    %135 = arith.truncf %134 : vector<2x128xf32> to vector<2x128xbf16>
    %c0_68 = arith.constant 0 : index
    %c0_69 = arith.constant 0 : index
    %136 = vector.load %arg12[%c0_68, %c0_69] : memref<128x128xbf16, #tpu.memory_space<vmem>>, vector<128x128xbf16>
    %cst_70 = arith.constant dense<0.000000e+00> : vector<2x128xf32>
    %137 = tpu.matmul %135, %136, %cst_70 {dimension_numbers = #tpu.dot_dimension_numbers<[1], [0], [0], [1], [0, 0, 1, 1], [], []>} : vector<2x128xbf16>, vector<128x128xbf16>, vector<2x128xf32> -> vector<2x128xf32>
    %c0_71 = arith.constant 0 : index
    %c0_72 = arith.constant 0 : index
    %138 = vector.load %arg13[%c0_71, %c0_72] : memref<1x128xf32, #tpu.memory_space<vmem>>, vector<1x128xf32>
    %139 = vector.broadcast %138 : vector<1x128xf32> to vector<2x128xf32>
    %140 = arith.addf %137, %139 : vector<2x128xf32>
    %cst_73 = arith.constant 0.000000e+00 : f32
    %141 = vector.broadcast %cst_73 : f32 to vector<2x128xf32>
    %142 = arith.maximumf %140, %141 : vector<2x128xf32>
    %143 = arith.truncf %142 : vector<2x128xf32> to vector<2x128xbf16>
    %c0_74 = arith.constant 0 : index
    %c0_75 = arith.constant 0 : index
    %144 = vector.load %arg14[%c0_74, %c0_75] : memref<128x128xbf16, #tpu.memory_space<vmem>>, vector<128x128xbf16>
    %cst_76 = arith.constant dense<0.000000e+00> : vector<2x128xf32>
    %145 = tpu.matmul %143, %144, %cst_76 {dimension_numbers = #tpu.dot_dimension_numbers<[1], [0], [0], [1], [0, 0, 1, 1], [], []>} : vector<2x128xbf16>, vector<128x128xbf16>, vector<2x128xf32> -> vector<2x128xf32>
    %c0_77 = arith.constant 0 : index
    %c0_78 = arith.constant 0 : index
    %146 = vector.load %arg15[%c0_77, %c0_78] : memref<1x128xf32, #tpu.memory_space<vmem>>, vector<1x128xf32>
    %147 = vector.broadcast %146 : vector<1x128xf32> to vector<2x128xf32>
    %148 = arith.addf %145, %147 : vector<2x128xf32>
    %c0_79 = arith.constant 0 : index
    %c0_80 = arith.constant 0 : index
    %c0_81 = arith.constant 0 : index
    %149 = vector.load %arg16[%c0_79, %c0_80, %c0_81] : memref<1x2x128xf32, #tpu.memory_space<vmem>>, vector<1x2x128xf32>
    %150 = vector.shape_cast %149 : vector<1x2x128xf32> to vector<2x128xf32>
    %151 = vector.shape_cast %148 : vector<2x128xf32> to vector<1x2x128xf32>
    tpu.vector_store %arg16[%c0_79, %c0_80, %c0_81], %151 {strides = array<i32>} : memref<1x2x128xf32, #tpu.memory_space<vmem>>, vector<1x2x128xf32>,
    return
  }
  func.func @transform_0(%arg0: i32) -> (i32, i32, i32) {
    %c0_i32 = arith.constant 0 : i32
    %c0_i32_0 = arith.constant 0 : i32
    %c0_i32_1 = arith.constant 0 : i32
    return %arg0, %c0_i32, %c0_i32_0 : i32, i32, i32
  }
  func.func @transform_1(%arg0: i32) -> (i32, i32, i32) {
    %c0_i32 = arith.constant 0 : i32
    %c0_i32_0 = arith.constant 0 : i32
    %c0_i32_1 = arith.constant 0 : i32
    return %arg0, %c0_i32, %c0_i32_0 : i32, i32, i32
  }
  func.func @transform_2(%arg0: i32) -> (i32, i32, i32) {
    %c0_i32 = arith.constant 0 : i32
    %c0_i32_0 = arith.constant 0 : i32
    %c0_i32_1 = arith.constant 0 : i32
    return %arg0, %c0_i32, %c0_i32_0 : i32, i32, i32
  }
  func.func @transform_3(%arg0: i32) -> (i32, i32, i32) {
    %c0_i32 = arith.constant 0 : i32
    %c0_i32_0 = arith.constant 0 : i32
    %c0_i32_1 = arith.constant 0 : i32
    return %arg0, %c0_i32, %c0_i32_0 : i32, i32, i32
  }
  func.func @transform_4(%arg0: i32) -> (i32, i32, i32) {
    %c0_i32 = arith.constant 0 : i32
    %c0_i32_0 = arith.constant 0 : i32
    %c0_i32_1 = arith.constant 0 : i32
    %c0_i32_2 = arith.constant 0 : i32
    return %c0_i32, %c0_i32_0, %c0_i32_1 : i32, i32, i32
  }
  func.func @transform_5(%arg0: i32) -> (i32, i32, i32) {
    %c0_i32 = arith.constant 0 : i32
    %c0_i32_0 = arith.constant 0 : i32
    %c0_i32_1 = arith.constant 0 : i32
    %c0_i32_2 = arith.constant 0 : i32
    return %c0_i32, %c0_i32_0, %c0_i32_1 : i32, i32, i32
  }
  func.func @transform_6(%arg0: i32) -> (i32, i32, i32) {
    %c0_i32 = arith.constant 0 : i32
    %c0_i32_0 = arith.constant 0 : i32
    %c0_i32_1 = arith.constant 0 : i32
    %c0_i32_2 = arith.constant 0 : i32
    return %c0_i32, %c0_i32_0, %c0_i32_1 : i32, i32, i32
  }
  func.func @transform_7(%arg0: i32) -> (i32, i32, i32) {
    %c0_i32 = arith.constant 0 : i32
    %c0_i32_0 = arith.constant 0 : i32
    %c0_i32_1 = arith.constant 0 : i32
    %c0_i32_2 = arith.constant 0 : i32
    return %c0_i32, %c0_i32_0, %c0_i32_1 : i32, i32, i32
  }
  func.func @transform_8(%arg0: i32) -> (i32, i32, i32) {
    %c0_i32 = arith.constant 0 : i32
    %c0_i32_0 = arith.constant 0 : i32
    %c0_i32_1 = arith.constant 0 : i32
    %c0_i32_2 = arith.constant 0 : i32
    return %c0_i32, %c0_i32_0, %c0_i32_1 : i32, i32, i32
  }
  func.func @transform_9(%arg0: i32) -> (i32, i32, i32) {
    %c0_i32 = arith.constant 0 : i32
    %c0_i32_0 = arith.constant 0 : i32
    %c0_i32_1 = arith.constant 0 : i32
    %c0_i32_2 = arith.constant 0 : i32
    return %c0_i32, %c0_i32_0, %c0_i32_1 : i32, i32, i32
  }
  func.func @transform_10(%arg0: i32) -> (i32, i32, i32) {
    %c0_i32 = arith.constant 0 : i32
    %c0_i32_0 = arith.constant 0 : i32
    %c0_i32_1 = arith.constant 0 : i32
    %c0_i32_2 = arith.constant 0 : i32
    return %c0_i32, %c0_i32_0, %c0_i32_1 : i32, i32, i32
  }
  func.func @transform_11(%arg0: i32) -> (i32, i32) {
    %c0_i32 = arith.constant 0 : i32
    %c0_i32_0 = arith.constant 0 : i32
    %c0_i32_1 = arith.constant 0 : i32
    return %c0_i32, %c0_i32_0 : i32, i32
  }
  func.func @transform_12(%arg0: i32) -> (i32, i32) {
    %c0_i32 = arith.constant 0 : i32
    %c0_i32_0 = arith.constant 0 : i32
    %c0_i32_1 = arith.constant 0 : i32
    return %c0_i32, %c0_i32_0 : i32, i32
  }
  func.func @transform_13(%arg0: i32) -> (i32, i32) {
    %c0_i32 = arith.constant 0 : i32
    %c0_i32_0 = arith.constant 0 : i32
    %c0_i32_1 = arith.constant 0 : i32
    return %c0_i32, %c0_i32_0 : i32, i32
  }
  func.func @transform_14(%arg0: i32) -> (i32, i32) {
    %c0_i32 = arith.constant 0 : i32
    %c0_i32_0 = arith.constant 0 : i32
    %c0_i32_1 = arith.constant 0 : i32
    return %c0_i32, %c0_i32_0 : i32, i32
  }
  func.func @transform_15(%arg0: i32) -> (i32, i32, i32) {
    %c0_i32 = arith.constant 0 : i32
    %c0_i32_0 = arith.constant 0 : i32
    %c0_i32_1 = arith.constant 0 : i32
    return %arg0, %c0_i32, %c0_i32_0 : i32, i32, i32
  }
}

</mosaic_0001>

<llo_original>
// kernel: forward.1
$region0: #{forward.1}
  #allocation0 [shape = 'u32[]', space=smem, size = 0x4, offset = 0x4, fixed_abs, tag = 'smem constant byte address 0x4 - core index']
  #allocation1 [shape = 'u32[144,128]{1,0:T(1,128)}', space=vmem, size = 0x12000, scoped, tag = 'internal scratch']
  %s0 = inlined_call_operand.vmem [shape: bf16[2,16,16], index: 0, kind: input, shape index: {}]
  %s1 = inlined_call_operand.vmem [shape: f32[2,16,128], index: 1, kind: input, shape index: {}]
  %s2 = inlined_call_operand.vmem [shape: f32[2,2,16], index: 2, kind: input, shape index: {}]
  %s3 = inlined_call_operand.vmem [shape: f32[2,16,2], index: 3, kind: input, shape index: {}]
  %s4 = inlined_call_operand.vmem [shape: bf16[2,128,128], index: 4, kind: input, shape index: {}]
  %s5 = inlined_call_operand.vmem [shape: f32[2,1,128], index: 5, kind: input, shape index: {}]
  %s6 = inlined_call_operand.vmem [shape: bf16[2,128,128], index: 6, kind: input, shape index: {}]
  %s7 = inlined_call_operand.vmem [shape: f32[2,1,128], index: 7, kind: input, shape index: {}]
  %s8 = inlined_call_operand.vmem [shape: f32[2,1,128], index: 8, kind: input, shape index: {}, may-alias: {8,10}]
  %s9 = inlined_call_operand.vmem [shape: f32[2,1,128], index: 9, kind: input, shape index: {}]
  %s10 = inlined_call_operand.vmem [shape: f32[2,1,128], index: 10, kind: input, shape index: {}, may-alias: {8,10}]
  %s11 = inlined_call_operand.hbm [shape: bf16[128,128], index: 11, kind: input, shape index: {}]
  %s12 = inlined_call_operand.vmem [shape: f32[1,128], index: 12, kind: input, shape index: {}]
  %s13 = inlined_call_operand.hbm [shape: bf16[128,128], index: 13, kind: input, shape index: {}]
  %s14 = inlined_call_operand.vmem [shape: f32[1,128], index: 14, kind: input, shape index: {}]
  %s15 = inlined_call_operand.hbm [shape: f32[2,2,128], index: 15, kind: output, shape index: {}]
  %s16 = sld [smem:[#allocation0]]
  $region101: #{forward.1} parent=0
    _
  %s18 = ssub.s32 1, %s16
  %s19 = scalar_select 0, %s18, %s16
  $region1: #{forward.1} parent=0
    #allocation2 [shape = 'u8[32768]{0}', space=vmem, size = 0x8000, scoped, tag = 'input window, operand 11, single buffered']
    #allocation3 [shape = 's32[2]{0}', space=sflag, size = 0x8, scoped, tag = 'scoped memory for forward.1']
    #allocation4 [shape = 's32[2]{0}', space=sflag, size = 0x8, scoped, tag = 'scoped memory for forward.1']
    #allocation5 [shape = 'u8[32768]{0}', space=vmem, size = 0x8000, scoped, tag = 'input window, operand 13, single buffered']
    #allocation6 [shape = 's32[1]{0}', space=sflag, size = 0x4, scoped, tag = 'scoped memory for forward.1']
    #allocation7 [shape = 'u8[2048]{0}', space=vmem, size = 0x800, scoped, tag = 'output window, operand 0']
    %20 = vsyncpa [#allocation3], 0
    %21 = vsyncpa [#allocation6], 0
    %22 = vsyncpa [#allocation4], 0
    %s23 = scalar_lea.sflag [#allocation4], 1
    %24 = vsyncpa %s23, 0
    loop: start=0, step=1, limit=4
    $region2: #{forward.1} parent=1 // loop_pre_header
      _
    $region3: #{forward.1} parent=1 // loop_header
      %s26 = sphi 0, %s30
      %p27 = scmp.ge.s32.totalorder %s26, 4
      %s36 = sphi 0, %s38
      %s39 = sphi 0, %s36
      %s40 = sphi 0, %s39
      %s56 = sphi 0, %s40
      %s62 = sphi 0, %s64
      %s65 = sphi 0, %s62
      %s66 = sphi 0, %s65
      %s82 = sphi 0, %s66
      %s88 = sphi 0, %s90
      %s91 = sphi 0, %s88
      %s92 = sphi 0, %s91
      %s108 = sphi 0, %s92
      %s114 = sphi 0, %s116
      %s117 = sphi 0, %s114
      %s118 = sphi 0, %s117
      %s134 = sphi 0, %s118
      %s138 = sphi 0, %s138
      %s140 = sphi 0, %s138
      %s141 = sphi 0, %s140
      %s155 = sphi 0, %s141
      %s159 = sphi 0, %s159
      %s161 = sphi 0, %s159
      %s162 = sphi 0, %s161
      %s176 = sphi 0, %s162
      %s180 = sphi 0, %s180
      %s182 = sphi 0, %s180
      %s183 = sphi 0, %s182
      %s197 = sphi 0, %s183
      %s201 = sphi 0, %s201
      %s203 = sphi 0, %s201
      %s204 = sphi 0, %s203
      %s218 = sphi 0, %s204
      %s222 = sphi 0, %s222
      %s224 = sphi 0, %s222
      %s225 = sphi 0, %s224
      %s239 = sphi 0, %s225
      %s243 = sphi 0, %s243
      %s245 = sphi 0, %s243
      %s246 = sphi 0, %s245
      %s260 = sphi 0, %s246
      %s264 = sphi 0, %s264
      %s266 = sphi 0, %s264
      %s267 = sphi 0, %s266
      %s281 = sphi 0, %s267
      %s285 = sphi 0, %s285
      %s287 = sphi 0, %s285
      %s288 = sphi 0, %s287
      %s302 = sphi 0, %s288
      %s306 = sphi 0, %s306
      %s308 = sphi 0, %s306
      %s309 = sphi 0, %s308
      %s323 = sphi 0, %s309
      %s327 = sphi 0, %s327
      %s329 = sphi 0, %s327
      %s330 = sphi 0, %s329
      %s344 = sphi 0, %s330
      %s348 = sphi 0, %s348
      %s350 = sphi 0, %s348
      %s351 = sphi 0, %s350
      %s365 = sphi 0, %s351
      %s371 = sphi 0, %s373
      %s374 = sphi 0, %s371
      %s375 = sphi 0, %s374
      %s391 = sphi 0, %s375
    $region4: #{forward.1} parent=1 // loop_header_branch
      %29 = sbr.rel (%p27) target = $region8
    $region5: #{forward.1} parent=1 // loop_body
      %s31 = ssub.s32 %s26, 1
      %s32 = ssub.s32 %s26, 2
      %s33 = sadd.s32 %s26, 1
      %s34 = ssub.s32 %s26, %s33
      %p35 = scmp.eq.s32.totalorder %s34, 0
      %s37 = sadd.s32 %s36, 1
      %s38 = scalar_select %p35, %s36, %s37
      %p41 = pneg %p35
      %p42 = scmp.eq.s32.totalorder %s26, 1
      %p43 = por %p41, %p42
      %p44 = scmp.ne.s32.totalorder %s36, %s39
      %p45 = scmp.eq.s32.totalorder %s26, 0
      %p46 = por %p44, %p45
      %p47 = scmp.ne.s32.totalorder %s36, %s39
      %p48 = scmp.eq.s32.totalorder %s31, 1
      %p49 = por %p47, %p48
      %p50 = scmp.ne.s32.totalorder %s39, %s40
      %p51 = scmp.eq.s32.totalorder %s31, 0
      %p52 = por %p50, %p51
      %p53 = scmp.ne.s32.totalorder %s39, %s40
      %p54 = scmp.eq.s32.totalorder %s32, 1
      %p55 = por %p53, %p54
      %p57 = scmp.ne.s32.totalorder %s40, %s56
      %p58 = scmp.eq.s32.totalorder %s32, 0
      %p59 = por %p57, %p58
      %s60 = ssub.s32 %s26, %s33
      %p61 = scmp.eq.s32.totalorder %s60, 0
      %s63 = sadd.s32 %s62, 1
      %s64 = scalar_select %p61, %s62, %s63
      %p67 = pneg %p61
      %p68 = scmp.eq.s32.totalorder %s26, 1
      %p69 = por %p67, %p68
      %p70 = scmp.ne.s32.totalorder %s62, %s65
      %p71 = scmp.eq.s32.totalorder %s26, 0
      %p72 = por %p70, %p71
      %p73 = scmp.ne.s32.totalorder %s62, %s65
      %p74 = scmp.eq.s32.totalorder %s31, 1
      %p75 = por %p73, %p74
      %p76 = scmp.ne.s32.totalorder %s65, %s66
      %p77 = scmp.eq.s32.totalorder %s31, 0
      %p78 = por %p76, %p77
      %p79 = scmp.ne.s32.totalorder %s65, %s66
      %p80 = scmp.eq.s32.totalorder %s32, 1
      %p81 = por %p79, %p80
      %p83 = scmp.ne.s32.totalorder %s66, %s82
      %p84 = scmp.eq.s32.totalorder %s32, 0
      %p85 = por %p83, %p84
      %s86 = ssub.s32 %s26, %s33
      %p87 = scmp.eq.s32.totalorder %s86, 0
      %s89 = sadd.s32 %s88, 1
      %s90 = scalar_select %p87, %s88, %s89
      %p93 = pneg %p87
      %p94 = scmp.eq.s32.totalorder %s26, 1
      %p95 = por %p93, %p94
      %p96 = scmp.ne.s32.totalorder %s88, %s91
      %p97 = scmp.eq.s32.totalorder %s26, 0
      %p98 = por %p96, %p97
      %p99 = scmp.ne.s32.totalorder %s88, %s91
      %p100 = scmp.eq.s32.totalorder %s31, 1
      %p101 = por %p99, %p100
      %p102 = scmp.ne.s32.totalorder %s91, %s92
      %p103 = scmp.eq.s32.totalorder %s31, 0
      %p104 = por %p102, %p103
      %p105 = scmp.ne.s32.totalorder %s91, %s92
      %p106 = scmp.eq.s32.totalorder %s32, 1
      %p107 = por %p105, %p106
      %p109 = scmp.ne.s32.totalorder %s92, %s108
      %p110 = scmp.eq.s32.totalorder %s32, 0
      %p111 = por %p109, %p110
      %s112 = ssub.s32 %s26, %s33
      %p113 = scmp.eq.s32.totalorder %s112, 0
      %s115 = sadd.s32 %s114, 1
      %s116 = scalar_select %p113, %s114, %s115
      %p119 = pneg %p113
      %p120 = scmp.eq.s32.totalorder %s26, 1
      %p121 = por %p119, %p120
      %p122 = scmp.ne.s32.totalorder %s114, %s117
      %p123 = scmp.eq.s32.totalorder %s26, 0
      %p124 = por %p122, %p123
      %p125 = scmp.ne.s32.totalorder %s114, %s117
      %p126 = scmp.eq.s32.totalorder %s31, 1
      %p127 = por %p125, %p126
      %p128 = scmp.ne.s32.totalorder %s117, %s118
      %p129 = scmp.eq.s32.totalorder %s31, 0
      %p130 = por %p128, %p129
      %p131 = scmp.ne.s32.totalorder %s117, %s118
      %p132 = scmp.eq.s32.totalorder %s32, 1
      %p133 = por %p131, %p132
      %p135 = scmp.ne.s32.totalorder %s118, %s134
      %p136 = scmp.eq.s32.totalorder %s32, 0
      %p137 = por %p135, %p136
      %s139 = sadd.s32 %s138, 1
      %p142 = scmp.eq.s32.totalorder %s26, 1
      %p143 = scmp.ne.s32.totalorder %s138, %s140
      %p144 = scmp.eq.s32.totalorder %s26, 0
      %p145 = por %p143, %p144
      %p146 = scmp.ne.s32.totalorder %s138, %s140
      %p147 = scmp.eq.s32.totalorder %s31, 1
      %p148 = por %p146, %p147
      %p149 = scmp.ne.s32.totalorder %s140, %s141
      %p150 = scmp.eq.s32.totalorder %s31, 0
      %p151 = por %p149, %p150
      %p152 = scmp.ne.s32.totalorder %s140, %s141
      %p153 = scmp.eq.s32.totalorder %s32, 1
      %p154 = por %p152, %p153
      %p156 = scmp.ne.s32.totalorder %s141, %s155
      %p157 = scmp.eq.s32.totalorder %s32, 0
      %p158 = por %p156, %p157
      %s160 = sadd.s32 %s159, 1
      %p163 = scmp.eq.s32.totalorder %s26, 1
      %p164 = scmp.ne.s32.totalorder %s159, %s161
      %p165 = scmp.eq.s32.totalorder %s26, 0
      %p166 = por %p164, %p165
      %p167 = scmp.ne.s32.totalorder %s159, %s161
      %p168 = scmp.eq.s32.totalorder %s31, 1
      %p169 = por %p167, %p168
      %p170 = scmp.ne.s32.totalorder %s161, %s162
      %p171 = scmp.eq.s32.totalorder %s31, 0
      %p172 = por %p170, %p171
      %p173 = scmp.ne.s32.totalorder %s161, %s162
      %p174 = scmp.eq.s32.totalorder %s32, 1
      %p175 = por %p173, %p174
      %p177 = scmp.ne.s32.totalorder %s162, %s176
      %p178 = scmp.eq.s32.totalorder %s32, 0
      %p179 = por %p177, %p178
      %s181 = sadd.s32 %s180, 1
      %p184 = scmp.eq.s32.totalorder %s26, 1
      %p185 = scmp.ne.s32.totalorder %s180, %s182
      %p186 = scmp.eq.s32.totalorder %s26, 0
      %p187 = por %p185, %p186
      %p188 = scmp.ne.s32.totalorder %s180, %s182
      %p189 = scmp.eq.s32.totalorder %s31, 1
      %p190 = por %p188, %p189
      %p191 = scmp.ne.s32.totalorder %s182, %s183
      %p192 = scmp.eq.s32.totalorder %s31, 0
      %p193 = por %p191, %p192
      %p194 = scmp.ne.s32.totalorder %s182, %s183
      %p195 = scmp.eq.s32.totalorder %s32, 1
      %p196 = por %p194, %p195
      %p198 = scmp.ne.s32.totalorder %s183, %s197
      %p199 = scmp.eq.s32.totalorder %s32, 0
      %p200 = por %p198, %p199
      %s202 = sadd.s32 %s201, 1
      %p205 = scmp.eq.s32.totalorder %s26, 1
      %p206 = scmp.ne.s32.totalorder %s201, %s203
      %p207 = scmp.eq.s32.totalorder %s26, 0
      %p208 = por %p206, %p207
      %p209 = scmp.ne.s32.totalorder %s201, %s203
      %p210 = scmp.eq.s32.totalorder %s31, 1
      %p211 = por %p209, %p210
      %p212 = scmp.ne.s32.totalorder %s203, %s204
      %p213 = scmp.eq.s32.totalorder %s31, 0
      %p214 = por %p212, %p213
      %p215 = scmp.ne.s32.totalorder %s203, %s204
      %p216 = scmp.eq.s32.totalorder %s32, 1
      %p217 = por %p215, %p216
      %p219 = scmp.ne.s32.totalorder %s204, %s218
      %p220 = scmp.eq.s32.totalorder %s32, 0
      %p221 = por %p219, %p220
      %s223 = sadd.s32 %s222, 1
      %p226 = scmp.eq.s32.totalorder %s26, 1
      %p227 = scmp.ne.s32.totalorder %s222, %s224
      %p228 = scmp.eq.s32.totalorder %s26, 0
      %p229 = por %p227, %p228
      %p230 = scmp.ne.s32.totalorder %s222, %s224
      %p231 = scmp.eq.s32.totalorder %s31, 1
      %p232 = por %p230, %p231
      %p233 = scmp.ne.s32.totalorder %s224, %s225
      %p234 = scmp.eq.s32.totalorder %s31, 0
      %p235 = por %p233, %p234
      %p236 = scmp.ne.s32.totalorder %s224, %s225
      %p237 = scmp.eq.s32.totalorder %s32, 1
      %p238 = por %p236, %p237
      %p240 = scmp.ne.s32.totalorder %s225, %s239
      %p241 = scmp.eq.s32.totalorder %s32, 0
      %p242 = por %p240, %p241
      %s244 = sadd.s32 %s243, 1
      %p247 = scmp.eq.s32.totalorder %s26, 1
      %p248 = scmp.ne.s32.totalorder %s243, %s245
      %p249 = scmp.eq.s32.totalorder %s26, 0
      %p250 = por %p248, %p249
      %p251 = scmp.ne.s32.totalorder %s243, %s245
      %p252 = scmp.eq.s32.totalorder %s31, 1
      %p253 = por %p251, %p252
      %p254 = scmp.ne.s32.totalorder %s245, %s246
      %p255 = scmp.eq.s32.totalorder %s31, 0
      %p256 = por %p254, %p255
      %p257 = scmp.ne.s32.totalorder %s245, %s246
      %p258 = scmp.eq.s32.totalorder %s32, 1
      %p259 = por %p257, %p258
      %p261 = scmp.ne.s32.totalorder %s246, %s260
      %p262 = scmp.eq.s32.totalorder %s32, 0
      %p263 = por %p261, %p262
      %s265 = sadd.s32 %s264, 1
      %p268 = scmp.eq.s32.totalorder %s26, 1
      %p269 = scmp.ne.s32.totalorder %s264, %s266
      %p270 = scmp.eq.s32.totalorder %s26, 0
      %p271 = por %p269, %p270
      %p272 = scmp.ne.s32.totalorder %s264, %s266
      %p273 = scmp.eq.s32.totalorder %s31, 1
      %p274 = por %p272, %p273
      %p275 = scmp.ne.s32.totalorder %s266, %s267
      %p276 = scmp.eq.s32.totalorder %s31, 0
      %p277 = por %p275, %p276
      %p278 = scmp.ne.s32.totalorder %s266, %s267
      %p279 = scmp.eq.s32.totalorder %s32, 1
      %p280 = por %p278, %p279
      %p282 = scmp.ne.s32.totalorder %s267, %s281
      %p283 = scmp.eq.s32.totalorder %s32, 0
      %p284 = por %p282, %p283
      %s286 = sadd.s32 %s285, 1
      %p289 = scmp.eq.s32.totalorder %s26, 1
      %p290 = scmp.ne.s32.totalorder %s285, %s287
      %p291 = scmp.eq.s32.totalorder %s26, 0
      %p292 = por %p290, %p291
      %p293 = scmp.ne.s32.totalorder %s285, %s287
      %p294 = scmp.eq.s32.totalorder %s31, 1
      %p295 = por %p293, %p294
      %p296 = scmp.ne.s32.totalorder %s287, %s288
      %p297 = scmp.eq.s32.totalorder %s31, 0
      %p298 = por %p296, %p297
      %p299 = scmp.ne.s32.totalorder %s287, %s288
      %p300 = scmp.eq.s32.totalorder %s32, 1
      %p301 = por %p299, %p300
      %p303 = scmp.ne.s32.totalorder %s288, %s302
      %p304 = scmp.eq.s32.totalorder %s32, 0
      %p305 = por %p303, %p304
      %s307 = sadd.s32 %s306, 1
      %p310 = scmp.eq.s32.totalorder %s26, 1
      %p311 = scmp.ne.s32.totalorder %s306, %s308
      %p312 = scmp.eq.s32.totalorder %s26, 0
      %p313 = por %p311, %p312
      %p314 = scmp.ne.s32.totalorder %s306, %s308
      %p315 = scmp.eq.s32.totalorder %s31, 1
      %p316 = por %p314, %p315
      %p317 = scmp.ne.s32.totalorder %s308, %s309
      %p318 = scmp.eq.s32.totalorder %s31, 0
      %p319 = por %p317, %p318
      %p320 = scmp.ne.s32.totalorder %s308, %s309
      %p321 = scmp.eq.s32.totalorder %s32, 1
      %p322 = por %p320, %p321
      %p324 = scmp.ne.s32.totalorder %s309, %s323
      %p325 = scmp.eq.s32.totalorder %s32, 0
      %p326 = por %p324, %p325
      %s328 = sadd.s32 %s327, 1
      %p331 = scmp.eq.s32.totalorder %s26, 1
      %p332 = scmp.ne.s32.totalorder %s327, %s329
      %p333 = scmp.eq.s32.totalorder %s26, 0
      %p334 = por %p332, %p333
      %p335 = scmp.ne.s32.totalorder %s327, %s329
      %p336 = scmp.eq.s32.totalorder %s31, 1
      %p337 = por %p335, %p336
      %p338 = scmp.ne.s32.totalorder %s329, %s330
      %p339 = scmp.eq.s32.totalorder %s31, 0
      %p340 = por %p338, %p339
      %p341 = scmp.ne.s32.totalorder %s329, %s330
      %p342 = scmp.eq.s32.totalorder %s32, 1
      %p343 = por %p341, %p342
      %p345 = scmp.ne.s32.totalorder %s330, %s344
      %p346 = scmp.eq.s32.totalorder %s32, 0
      %p347 = por %p345, %p346
      %s349 = sadd.s32 %s348, 1
      %p352 = scmp.eq.s32.totalorder %s26, 1
      %p353 = scmp.ne.s32.totalorder %s348, %s350
      %p354 = scmp.eq.s32.totalorder %s26, 0
      %p355 = por %p353, %p354
      %p356 = scmp.ne.s32.totalorder %s348, %s350
      %p357 = scmp.eq.s32.totalorder %s31, 1
      %p358 = por %p356, %p357
      %p359 = scmp.ne.s32.totalorder %s350, %s351
      %p360 = scmp.eq.s32.totalorder %s31, 0
      %p361 = por %p359, %p360
      %p362 = scmp.ne.s32.totalorder %s350, %s351
      %p363 = scmp.eq.s32.totalorder %s32, 1
      %p364 = por %p362, %p363
      %p366 = scmp.ne.s32.totalorder %s351, %s365
      %p367 = scmp.eq.s32.totalorder %s32, 0
      %p368 = por %p366, %p367
      %s369 = ssub.s32 %s26, %s33
      %p370 = scmp.eq.s32.totalorder %s369, 0
      %s372 = sadd.s32 %s371, 1
      %s373 = scalar_select %p370, %s371, %s372
      %p376 = pneg %p370
      %p377 = scmp.eq.s32.totalorder %s26, 1
      %p378 = por %p376, %p377
      %p379 = scmp.ne.s32.totalorder %s371, %s374
      %p380 = scmp.eq.s32.totalorder %s26, 0
      %p381 = por %p379, %p380
      %p382 = scmp.ne.s32.totalorder %s371, %s374
      %p383 = scmp.eq.s32.totalorder %s31, 1
      %p384 = por %p382, %p383
      %p385 = scmp.ne.s32.totalorder %s374, %s375
      %p386 = scmp.eq.s32.totalorder %s31, 0
      %p387 = por %p385, %p386
      %p388 = scmp.ne.s32.totalorder %s374, %s375
      %p389 = scmp.eq.s32.totalorder %s32, 1
      %p390 = por %p388, %p389
      %p392 = scmp.ne.s32.totalorder %s375, %s391
      %p393 = scmp.eq.s32.totalorder %s32, 0
      %p394 = por %p392, %p393
      %p395 = scmp.le.s32.totalorder 1, %s26
      %p396 = scmp.lt.s32.totalorder %s26, 3
      %p397 = pnand %p395, %p396
      %p398 = pneg %p397
      // Predicated region
      $region9: #{forward.1} parent=5 // pred_check
        _
      $region10: #{forward.1} parent=5 // pred_check_branch
        %400 = sbr.rel (%p397) target = $region12
      $region11: #{forward.1} parent=5 // pred_region
        %s401 = ssub.s32 %s26, 1
        // Predicated region
        $region13: #{forward.1} parent=11 // pred_check
          %p402 = pneg %p151
        $region14: #{forward.1} parent=11 // pred_check_branch
          %404 = sbr.rel (%p402) target = $region16
        $region15: #{forward.1} parent=11 // pred_region
          _
        $region16: #{forward.1} parent=11 // pred_fallthru
          _
        // Predicated region
        $region17: #{forward.1} parent=11 // pred_check
          %p405 = pneg %p172
        $region18: #{forward.1} parent=11 // pred_check_branch
          %407 = sbr.rel (%p405) target = $region20
        $region19: #{forward.1} parent=11 // pred_region
          _
        $region20: #{forward.1} parent=11 // pred_fallthru
          _
        // Predicated region
        $region21: #{forward.1} parent=11 // pred_check
          %p408 = pneg %p193
        $region22: #{forward.1} parent=11 // pred_check_branch
          %410 = sbr.rel (%p408) target = $region24
        $region23: #{forward.1} parent=11 // pred_region
          _
        $region24: #{forward.1} parent=11 // pred_fallthru
          _
        // Predicated region
        $region25: #{forward.1} parent=11 // pred_check
          %p411 = pneg %p214
        $region26: #{forward.1} parent=11 // pred_check_branch
          %413 = sbr.rel (%p411) target = $region28
        $region27: #{forward.1} parent=11 // pred_region
          _
        $region28: #{forward.1} parent=11 // pred_fallthru
          _
        // Predicated region
        $region29: #{forward.1} parent=11 // pred_check
          %p414 = pneg %p235
        $region30: #{forward.1} parent=11 // pred_check_branch
          %416 = sbr.rel (%p414) target = $region32
        $region31: #{forward.1} parent=11 // pred_region
          _
        $region32: #{forward.1} parent=11 // pred_fallthru
          _
        // Predicated region
        $region33: #{forward.1} parent=11 // pred_check
          %p417 = pneg %p256
        $region34: #{forward.1} parent=11 // pred_check_branch
          %419 = sbr.rel (%p417) target = $region36
        $region35: #{forward.1} parent=11 // pred_region
          _
        $region36: #{forward.1} parent=11 // pred_fallthru
          _
        // Predicated region
        $region37: #{forward.1} parent=11 // pred_check
          %p420 = pneg %p277
        $region38: #{forward.1} parent=11 // pred_check_branch
          %422 = sbr.rel (%p420) target = $region40
        $region39: #{forward.1} parent=11 // pred_region
          _
        $region40: #{forward.1} parent=11 // pred_fallthru
          _
        // Predicated region
        $region41: #{forward.1} parent=11 // pred_check
          %p423 = pneg %p298
        $region42: #{forward.1} parent=11 // pred_check_branch
          %425 = sbr.rel (%p423) target = $region44
        $region43: #{forward.1} parent=11 // pred_region
          %s427 = ssub.s32 1024, 1024
          %428 = vsyncadd [#allocation3], %s427
          %s429 = sshll.u32 [#allocation2], 4
          %s430 = int_to_ptr.vmem [resolvable:$true] %s429
          %435 = dma.hbm_to_vmem [thread:$0]  %s11, 1024, %s430, [#allocation3], 64, 64, 4
        $region44: #{forward.1} parent=11 // pred_fallthru
          _
        // Predicated region
        $region45: #{forward.1} parent=11 // pred_check
          %p436 = pneg %p319
        $region46: #{forward.1} parent=11 // pred_check_branch
          %438 = sbr.rel (%p436) target = $region48
        $region47: #{forward.1} parent=11 // pred_region
          _
        $region48: #{forward.1} parent=11 // pred_fallthru
          _
        // Predicated region
        $region49: #{forward.1} parent=11 // pred_check
          %p439 = pneg %p340
        $region50: #{forward.1} parent=11 // pred_check_branch
          %441 = sbr.rel (%p439) target = $region52
        $region51: #{forward.1} parent=11 // pred_region
          %s443 = ssub.s32 1024, 1024
          %444 = vsyncadd [#allocation6], %s443
          %s445 = sshll.u32 [#allocation5], 4
          %s446 = int_to_ptr.vmem [resolvable:$true] %s445
          %451 = dma.hbm_to_vmem [thread:$0]  %s13, 1024, %s446, [#allocation6], 64, 64, 4
        $region52: #{forward.1} parent=11 // pred_fallthru
          _
        // Predicated region
        $region53: #{forward.1} parent=11 // pred_check
          %p452 = pneg %p361
        $region54: #{forward.1} parent=11 // pred_check_branch
          %454 = sbr.rel (%p452) target = $region56
        $region55: #{forward.1} parent=11 // pred_region
          _
        $region56: #{forward.1} parent=11 // pred_fallthru
          _
      $region12: #{forward.1} parent=5 // pred_fallthru
        _
      %p455 = scmp.lt.s32.totalorder %s26, 2
      // Predicated region
      $region57: #{forward.1} parent=5 // pred_check
        %p456 = pneg %p455
      $region58: #{forward.1} parent=5 // pred_check_branch
        %458 = sbr.rel (%p456) target = $region60
      $region59: #{forward.1} parent=5 // pred_region
        // Predicated region
        $region61: #{forward.1} parent=59 // pred_check
          %p459 = pneg %p46
        $region62: #{forward.1} parent=59 // pred_check_branch
          %461 = sbr.rel (%p459) target = $region64
        $region63: #{forward.1} parent=59 // pred_region
          %p462 = scmp.lt.s32.totalorder %s26, 1
          %s463 = scalar_select %p462, %s26, 1
          %s464 = smul.addr %s463, 2
          %s465 = smul.addr %s464, 4
          %s466 = scalar_lea.vmem %s0, %s465
        $region64: #{forward.1} parent=59 // pred_fallthru
          _
        // Predicated region
        $region65: #{forward.1} parent=59 // pred_check
          %p467 = pneg %p72
        $region66: #{forward.1} parent=59 // pred_check_branch
          %469 = sbr.rel (%p467) target = $region68
        $region67: #{forward.1} parent=59 // pred_region
          %p470 = scmp.lt.s32.totalorder %s26, 1
          %s471 = scalar_select %p470, %s26, 1
          %s472 = smul.addr %s471, 2
          %s473 = smul.addr %s472, 8
          %s474 = scalar_lea.vmem %s1, %s473
        $region68: #{forward.1} parent=59 // pred_fallthru
          _
        // Predicated region
        $region69: #{forward.1} parent=59 // pred_check
          %p475 = pneg %p98
        $region70: #{forward.1} parent=59 // pred_check_branch
          %477 = sbr.rel (%p475) target = $region72
        $region71: #{forward.1} parent=59 // pred_region
          %p478 = scmp.lt.s32.totalorder %s26, 1
          %s479 = scalar_select %p478, %s26, 1
          %s480 = smul.addr %s479, 2
          %s481 = scalar_lea.vmem %s2, %s480
        $region72: #{forward.1} parent=59 // pred_fallthru
          _
        // Predicated region
        $region73: #{forward.1} parent=59 // pred_check
          %p482 = pneg %p124
        $region74: #{forward.1} parent=59 // pred_check_branch
          %484 = sbr.rel (%p482) target = $region76
        $region75: #{forward.1} parent=59 // pred_region
          %p485 = scmp.lt.s32.totalorder %s26, 1
          %s486 = scalar_select %p485, %s26, 1
          %s487 = smul.addr %s486, 2
          %s488 = smul.addr %s487, 8
          %s489 = scalar_lea.vmem %s3, %s488
        $region76: #{forward.1} parent=59 // pred_fallthru
          _
      $region60: #{forward.1} parent=5 // pred_fallthru
        _
      %p490 = scmp.le.s32.totalorder 1, %s26
      %p491 = scmp.lt.s32.totalorder %s26, 3
      %p492 = pnand %p490, %p491
      %p493 = pneg %p492
      // Predicated region
      $region77: #{forward.1} parent=5 // pred_check
        _
      $region78: #{forward.1} parent=5 // pred_check_branch
        %495 = sbr.rel (%p492) target = $region80
      $region79: #{forward.1} parent=5 // pred_region
        %s496 = ssub.s32 %s26, 1
        // Predicated region
        $region81: #{forward.1} parent=79 // pred_check
          %p497 = pneg %p298
        $region82: #{forward.1} parent=79 // pred_check_branch
          %499 = sbr.rel (%p497) target = $region84
        $region83: #{forward.1} parent=79 // pred_region
          %500 = dma.done [#allocation3], 1024
        $region84: #{forward.1} parent=79 // pred_fallthru
          _
        // Predicated region
        $region85: #{forward.1} parent=79 // pred_check
          %p501 = pneg %p340
        $region86: #{forward.1} parent=79 // pred_check_branch
          %503 = sbr.rel (%p501) target = $region88
        $region87: #{forward.1} parent=79 // pred_region
          %504 = dma.done [#allocation6], 1024
        $region88: #{forward.1} parent=79 // pred_fallthru
          _
        %p505 = scmp.lt.s32.totalorder %s31, 1
        %s506 = scalar_select %p505, %s31, 1
        %s507 = smul.addr %s506, 2
        %s508 = smul.addr %s507, 4
        %s509 = scalar_lea.vmem %s0, %s508
        %p510 = pneg %p52
        %p511 = pneg %p49
        %p512 = scmp.lt.s32.totalorder %s31, 1
        %s513 = scalar_select %p512, %s31, 1
        %s514 = smul.addr %s513, 2
        %s515 = smul.addr %s514, 8
        %s516 = scalar_lea.vmem %s1, %s515
        %p517 = pneg %p78
        %p518 = pneg %p75
        %p519 = scmp.lt.s32.totalorder %s31, 1
        %s520 = scalar_select %p519, %s31, 1
        %s521 = smul.addr %s520, 2
        %s522 = scalar_lea.vmem %s2, %s521
        %p523 = pneg %p104
        %p524 = pneg %p101
        %p525 = scmp.lt.s32.totalorder %s31, 1
        %s526 = scalar_select %p525, %s31, 1
        %s527 = smul.addr %s526, 2
        %s528 = smul.addr %s527, 8
        %s529 = scalar_lea.vmem %s3, %s528
        %p530 = pneg %p130
        %p531 = pneg %p127
        %p532 = pneg %p151
        %p533 = pneg %p148
        %p534 = pneg %p172
        %p535 = pneg %p169
        %p536 = pneg %p193
        %p537 = pneg %p190
        %p538 = pneg %p214
        %p539 = pneg %p211
        %p540 = pneg %p235
        %p541 = pneg %p232
        %p542 = pneg %p256
        %p543 = pneg %p253
        %p544 = pneg %p277
        %p545 = pneg %p274
        %p546 = pneg %p298
        %p547 = pneg %p295
        %p548 = pneg %p319
        %p549 = pneg %p316
        %p550 = pneg %p340
        %p551 = pneg %p337
        %p552 = pneg %p361
        %p553 = pneg %p358
        %p554 = pneg %p387
        %p555 = pneg %p384
        %s556 = sand.u32 %s374, 1
        %s557 = scalar_lea.sflag [#allocation4], %s556
        %s558 = sand.u32 %s374, 1
        %s559 = smul.addr %s558, 2
        %s560 = scalar_lea.vmem [#allocation7], %s559
        %p561 = scmp.lt.s32.totalorder %s31, 1
        %s562 = scalar_select %p561, %s31, 1
        %s563 = smul.addr %s562, 2
        %s564 = smul.addr %s563, 4
        %s565 = scalar_lea.vmem %s0, %s564
        %p566 = scmp.lt.s32.totalorder %s31, 1
        %s567 = scalar_select %p566, %s31, 1
        %s568 = smul.addr %s567, 2
        %s569 = smul.addr %s568, 8
        %s570 = scalar_lea.vmem %s1, %s569
        %p571 = scmp.lt.s32.totalorder %s31, 1
        %s572 = scalar_select %p571, %s31, 1
        %s573 = smul.addr %s572, 2
        %s574 = scalar_lea.vmem %s2, %s573
        %p575 = scmp.lt.s32.totalorder %s31, 1
        %s576 = scalar_select %p575, %s31, 1
        %s577 = smul.addr %s576, 2
        %s578 = smul.addr %s577, 8
        %s579 = scalar_lea.vmem %s3, %s578
        %v581 = vld [vmem:[%s565] sm:$0xf]
        %v582 = vld [vmem:[%s565 + $0x4] sm:$0xf]
        %v583 = vld [vmem:[%s574] sm:$0x3]
        %v584 = vld [vmem:[%s579] sm:$0xff]
        %v585 = vld [vmem:[%s579 + $0x8] sm:$0xff]
        %v586 = vld [vmem:[%s570] sm:$0xff]
        %v587 = vld [vmem:[%s570 + $0x8] sm:$0xff]
        %v588 = vpack.c.bf16 %v587, %v586
        %v591 = vunpack.c.l.b16 %v581
        %v592 = vunpack.c.l.b16 %v582
        %v593 = vpack.c.b16 %v592, %v591
        %vm594 = vcmask 130048
        %v596 = vsel %vm594, %v593, 0
        %598 = vmatprep.subr.bf16.mxu0 0
        %599 = vmatpush1.bf16.msra.mxu0 %v588
        %600 = vmatprep.subr.bf16.mxu0 0
        %601 = vmatpush1.bf16.msra.mxu0 0
        %602 = vmatprep.subr.bf16.mxu0 0
        %603 = vmatpush1.bf16.msra.mxu0 0
        %604 = vmatprep.subr.bf16.mxu0 0
        %605 = vmatpush1.bf16.msra.mxu0 0
        %606 = vmatprep.subr.bf16.mxu0 0
        %607 = vmatpush1.bf16.msra.mxu0 0
        %608 = vmatprep.subr.bf16.mxu0 0
        %609 = vmatpush1.bf16.msra.mxu0 0
        %610 = vmatprep.subr.bf16.mxu0 0
        %611 = vmatpush1.bf16.msra.mxu0 0
        %612 = vmatprep.subr.bf16.mxu0 0
        %613 = vmatpush1.bf16.msra.mxu0 0
        %614 = vmatprep.subr.bf16.mxu0 0
        %615 = vmatpush1.bf16.msra.mxu0 0
        %616 = vmatprep.subr.bf16.mxu0 0
        %617 = vmatpush1.bf16.msra.mxu0 0
        %618 = vmatprep.subr.bf16.mxu0 0
        %619 = vmatpush1.bf16.msra.mxu0 0
        %620 = vmatprep.subr.bf16.mxu0 0
        %621 = vmatpush1.bf16.msra.mxu0 0
        %622 = vmatprep.subr.bf16.mxu0 0
        %623 = vmatpush1.bf16.msra.mxu0 0
        %624 = vmatprep.subr.bf16.mxu0 0
        %625 = vmatpush1.bf16.msra.mxu0 0
        %626 = vmatprep.subr.bf16.mxu0 0
        %627 = vmatpush1.bf16.msra.mxu0 0
        %628 = vmatprep.subr.bf16.mxu0 0
        %629 = vmatpush1.bf16.msra.mxu0 0
        %630 = vmatprep.mubr.bf16.mxu0 0
        %631 = vmatmul.mubr.bf16.gmra.mrb[0].mxu0 %v596
        %v632 = vpop.f32.mrb[0].mxu0
        %v633 = vadd.f32 0.0, %v632
        %v634 = vpop.f32.mrb[0].mxu0
        %v635 = vpop.f32.mrb[0].mxu0
        %v636 = vadd.f32 0.0, %v635
        %v637 = vpop.f32.mrb[0].mxu0
        %638 = vdwg.mxu0
        %v639 = vpack.c.bf16 %v636, %v633
        %v640 = vld [vmem:[%s4] sm:$0xf]
        %v641 = vld [vmem:[%s4 + $0x4] sm:$0xf]
        %v642 = vld [vmem:[%s4 + $0x8] sm:$0xf]
        %v643 = vld [vmem:[%s4 + $0xc] sm:$0xf]
        %v644 = vld [vmem:[%s4 + $0x10] sm:$0xf]
        %v645 = vld [vmem:[%s4 + $0x14] sm:$0xf]
        %v646 = vld [vmem:[%s4 + $0x18] sm:$0xf]
        %v647 = vld [vmem:[%s4 + $0x1c] sm:$0xf]
        %v648 = vld [vmem:[%s4 + $0x20] sm:$0xf]
        %v649 = vld [vmem:[%s4 + $0x24] sm:$0xf]
        %v650 = vld [vmem:[%s4 + $0x28] sm:$0xf]
        %v651 = vld [vmem:[%s4 + $0x2c] sm:$0xf]
        %v652 = vld [vmem:[%s4 + $0x30] sm:$0xf]
        %v653 = vld [vmem:[%s4 + $0x34] sm:$0xf]
        %v654 = vld [vmem:[%s4 + $0x38] sm:$0xf]
        %v655 = vld [vmem:[%s4 + $0x3c] sm:$0xf]
        %v656 = vld [vmem:[%s5] sm:$0x1]
        %v658 = vlaneseq
        %v659 = vshrl.u32 %v658, 7
        %v660 = vsub.s32 0, %v659
        %v661 = vrot.slane %v656, %v660
        %v679 = vunpack.c.l.b16 %v640
        %v680 = vunpack.c.l.b16 %v641
        %v681 = vunpack.c.l.b16 %v642
        %v682 = vunpack.c.l.b16 %v643
        %v683 = vunpack.c.l.b16 %v644
        %v684 = vunpack.c.l.b16 %v645
        %v685 = vunpack.c.l.b16 %v646
        %v686 = vunpack.c.l.b16 %v647
        %v687 = vunpack.c.l.b16 %v648
        %v688 = vunpack.c.l.b16 %v649
        %v689 = vunpack.c.l.b16 %v650
        %v690 = vunpack.c.l.b16 %v651
        %v691 = vunpack.c.l.b16 %v652
        %v692 = vunpack.c.l.b16 %v653
        %v693 = vunpack.c.l.b16 %v654
        %v694 = vunpack.c.l.b16 %v655
        %v695 = vpack.c.b16 %v680, %v679
        %v696 = vpack.c.b16 %v682, %v681
        %v697 = vpack.c.b16 %v684, %v683
        %v698 = vpack.c.b16 %v686, %v685
        %v699 = vpack.c.b16 %v688, %v687
        %v700 = vpack.c.b16 %v690, %v689
        %v701 = vpack.c.b16 %v692, %v691
        %v702 = vpack.c.b16 %v694, %v693
        %711 = vmatprep.subr.bf16.mxu0 0
        %712 = vmatpush1.bf16.msra.mxu0 %v695
        %713 = vmatprep.subr.bf16.mxu0 0
        %714 = vmatpush1.bf16.msra.mxu0 %v696
        %715 = vmatprep.subr.bf16.mxu0 0
        %716 = vmatpush1.bf16.msra.mxu0 %v697
        %717 = vmatprep.subr.bf16.mxu0 0
        %718 = vmatpush1.bf16.msra.mxu0 %v698
        %719 = vmatprep.subr.bf16.mxu0 0
        %720 = vmatpush1.bf16.msra.mxu0 %v699
        %721 = vmatprep.subr.bf16.mxu0 0
        %722 = vmatpush1.bf16.msra.mxu0 %v700
        %723 = vmatprep.subr.bf16.mxu0 0
        %724 = vmatpush1.bf16.msra.mxu0 %v701
        %725 = vmatprep.subr.bf16.mxu0 0
        %726 = vmatpush1.bf16.msra.mxu0 %v702
        %727 = vmatprep.subr.bf16.mxu0 0
        %728 = vmatpush1.bf16.msra.mxu0 0
        %729 = vmatprep.subr.bf16.mxu0 0
        %730 = vmatpush1.bf16.msra.mxu0 0
        %731 = vmatprep.subr.bf16.mxu0 0
        %732 = vmatpush1.bf16.msra.mxu0 0
        %733 = vmatprep.subr.bf16.mxu0 0
        %734 = vmatpush1.bf16.msra.mxu0 0
        %735 = vmatprep.subr.bf16.mxu0 0
        %736 = vmatpush1.bf16.msra.mxu0 0
        %737 = vmatprep.subr.bf16.mxu0 0
        %738 = vmatpush1.bf16.msra.mxu0 0
        %739 = vmatprep.subr.bf16.mxu0 0
        %740 = vmatpush1.bf16.msra.mxu0 0
        %741 = vmatprep.subr.bf16.mxu0 0
        %742 = vmatpush1.bf16.msra.mxu0 0
        %743 = vmatprep.mubr.bf16.mxu0 0
        %744 = vmatmul.mubr.bf16.gmra.mrb[0].mxu0 %v639
        %v745 = vpop.f32.mrb[0].mxu0
        %v746 = vadd.f32 %v661, %v745
        %v747 = vpop.f32.mrb[0].mxu0
        %v748 = vpop.f32.mrb[0].mxu0
        %v749 = vadd.f32 %v661, %v748
        %v750 = vpop.f32.mrb[0].mxu0
        %751 = vdwg.mxu0
        %v752 = vmax.f32 %v746, 0.0
        %v753 = vmax.f32 %v749, 0.0
        %v754 = vpack.c.bf16 %v753, %v752
        %v755 = vld [vmem:[%s6] sm:$0xf]
        %v756 = vld [vmem:[%s6 + $0x4] sm:$0xf]
        %v757 = vld [vmem:[%s6 + $0x8] sm:$0xf]
        %v758 = vld [vmem:[%s6 + $0xc] sm:$0xf]
        %v759 = vld [vmem:[%s6 + $0x10] sm:$0xf]
        %v760 = vld [vmem:[%s6 + $0x14] sm:$0xf]
        %v761 = vld [vmem:[%s6 + $0x18] sm:$0xf]
        %v762 = vld [vmem:[%s6 + $0x1c] sm:$0xf]
        %v763 = vld [vmem:[%s6 + $0x20] sm:$0xf]
        %v764 = vld [vmem:[%s6 + $0x24] sm:$0xf]
        %v765 = vld [vmem:[%s6 + $0x28] sm:$0xf]
        %v766 = vld [vmem:[%s6 + $0x2c] sm:$0xf]
        %v767 = vld [vmem:[%s6 + $0x30] sm:$0xf]
        %v768 = vld [vmem:[%s6 + $0x34] sm:$0xf]
        %v769 = vld [vmem:[%s6 + $0x38] sm:$0xf]
        %v770 = vld [vmem:[%s6 + $0x3c] sm:$0xf]
        %v771 = vld [vmem:[%s7] sm:$0x1]
        %v773 = vlaneseq
        %v774 = vshrl.u32 %v773, 7
        %v775 = vsub.s32 0, %v774
        %v776 = vrot.slane %v771, %v775
        %v794 = vunpack.c.l.b16 %v755
        %v795 = vunpack.c.l.b16 %v756
        %v796 = vunpack.c.l.b16 %v757
        %v797 = vunpack.c.l.b16 %v758
        %v798 = vunpack.c.l.b16 %v759
        %v799 = vunpack.c.l.b16 %v760
        %v800 = vunpack.c.l.b16 %v761
        %v801 = vunpack.c.l.b16 %v762
        %v802 = vunpack.c.l.b16 %v763
        %v803 = vunpack.c.l.b16 %v764
        %v804 = vunpack.c.l.b16 %v765
        %v805 = vunpack.c.l.b16 %v766
        %v806 = vunpack.c.l.b16 %v767
        %v807 = vunpack.c.l.b16 %v768
        %v808 = vunpack.c.l.b16 %v769
        %v809 = vunpack.c.l.b16 %v770
        %v810 = vpack.c.b16 %v795, %v794
        %v811 = vpack.c.b16 %v797, %v796
        %v812 = vpack.c.b16 %v799, %v798
        %v813 = vpack.c.b16 %v801, %v800
        %v814 = vpack.c.b16 %v803, %v802
        %v815 = vpack.c.b16 %v805, %v804
        %v816 = vpack.c.b16 %v807, %v806
        %v817 = vpack.c.b16 %v809, %v808
        %826 = vmatprep.subr.bf16.mxu0 0
        %827 = vmatpush1.bf16.msra.mxu0 %v810
        %828 = vmatprep.subr.bf16.mxu0 0
        %829 = vmatpush1.bf16.msra.mxu0 %v811
        %830 = vmatprep.subr.bf16.mxu0 0
        %831 = vmatpush1.bf16.msra.mxu0 %v812
        %832 = vmatprep.subr.bf16.mxu0 0
        %833 = vmatpush1.bf16.msra.mxu0 %v813
        %834 = vmatprep.subr.bf16.mxu0 0
        %835 = vmatpush1.bf16.msra.mxu0 %v814
        %836 = vmatprep.subr.bf16.mxu0 0
        %837 = vmatpush1.bf16.msra.mxu0 %v815
        %838 = vmatprep.subr.bf16.mxu0 0
        %839 = vmatpush1.bf16.msra.mxu0 %v816
        %840 = vmatprep.subr.bf16.mxu0 0
        %841 = vmatpush1.bf16.msra.mxu0 %v817
        %842 = vmatprep.subr.bf16.mxu0 0
        %843 = vmatpush1.bf16.msra.mxu0 0
        %844 = vmatprep.subr.bf16.mxu0 0
        %845 = vmatpush1.bf16.msra.mxu0 0
        %846 = vmatprep.subr.bf16.mxu0 0
        %847 = vmatpush1.bf16.msra.mxu0 0
        %848 = vmatprep.subr.bf16.mxu0 0
        %849 = vmatpush1.bf16.msra.mxu0 0
        %850 = vmatprep.subr.bf16.mxu0 0
        %851 = vmatpush1.bf16.msra.mxu0 0
        %852 = vmatprep.subr.bf16.mxu0 0
        %853 = vmatpush1.bf16.msra.mxu0 0
        %854 = vmatprep.subr.bf16.mxu0 0
        %855 = vmatpush1.bf16.msra.mxu0 0
        %856 = vmatprep.subr.bf16.mxu0 0
        %857 = vmatpush1.bf16.msra.mxu0 0
        %858 = vmatprep.mubr.bf16.mxu0 0
        %859 = vmatmul.mubr.bf16.gmra.mrb[0].mxu0 %v754
        %v860 = vpop.f32.mrb[0].mxu0
        %v861 = vadd.f32 %v776, %v860
        %v862 = vpop.f32.mrb[0].mxu0
        %v863 = vpop.f32.mrb[0].mxu0
        %v864 = vadd.f32 %v776, %v863
        %v865 = vpop.f32.mrb[0].mxu0
        %866 = vdwg.mxu0
        %v867 = vld [vmem:[%s10] sm:$0x1]
        %v868 = vmul.f32 %v861, %v861
        %v869 = vmul.f32 %v864, %v864
        %v871 = vsel %vm594, %v583, 0
        %873 = vmatprep.subr.mxu0 %v868
        %874 = vmatpush1.msra.mxu0 %v861
        %875 = vmatprep.subr.mxu0 %v869
        %876 = vmatpush1.msra.mxu0 %v864
        %877 = vmatprep.subr.mxu0 0.0
        %878 = vmatpush1.msra.mxu0 0.0
        %879 = vmatprep.subr.mxu0 0.0
        %880 = vmatpush1.msra.mxu0 0.0
        %881 = vmatprep.subr.mxu0 0.0
        %882 = vmatpush1.msra.mxu0 0.0
        %883 = vmatprep.subr.mxu0 0.0
        %884 = vmatpush1.msra.mxu0 0.0
        %885 = vmatprep.subr.mxu0 0.0
        %886 = vmatpush1.msra.mxu0 0.0
        %887 = vmatprep.subr.mxu0 0.0
        %888 = vmatpush1.msra.mxu0 0.0
        %889 = vmatprep.subr.mxu0 0.0
        %890 = vmatpush1.msra.mxu0 0.0
        %891 = vmatprep.subr.mxu0 0.0
        %892 = vmatpush1.msra.mxu0 0.0
        %893 = vmatprep.subr.mxu0 0.0
        %894 = vmatpush1.msra.mxu0 0.0
        %895 = vmatprep.subr.mxu0 0.0
        %896 = vmatpush1.msra.mxu0 0.0
        %897 = vmatprep.subr.mxu0 0.0
        %898 = vmatpush1.msra.mxu0 0.0
        %899 = vmatprep.subr.mxu0 0.0
        %900 = vmatpush1.msra.mxu0 0.0
        %901 = vmatprep.subr.mxu0 0.0
        %902 = vmatpush1.msra.mxu0 0.0
        %903 = vmatprep.subr.mxu0 0.0
        %904 = vmatpush1.msra.mxu0 0.0
        %905 = vmatprep.subr.mxu0 0.0
        %906 = vmatpush1.msra.mxu0 0.0
        %907 = vmatprep.subr.mxu0 0.0
        %908 = vmatpush1.msra.mxu0 0.0
        %909 = vmatprep.subr.mxu0 0.0
        %910 = vmatpush1.msra.mxu0 0.0
        %911 = vmatprep.subr.mxu0 0.0
        %912 = vmatpush1.msra.mxu0 0.0
        %913 = vmatprep.subr.mxu0 0.0
        %914 = vmatpush1.msra.mxu0 0.0
        %915 = vmatprep.subr.mxu0 0.0
        %916 = vmatpush1.msra.mxu0 0.0
        %917 = vmatprep.subr.mxu0 0.0
        %918 = vmatpush1.msra.mxu0 0.0
        %919 = vmatprep.subr.mxu0 0.0
        %920 = vmatpush1.msra.mxu0 0.0
        %921 = vmatprep.subr.mxu0 0.0
        %922 = vmatpush1.msra.mxu0 0.0
        %923 = vmatprep.subr.mxu0 0.0
        %924 = vmatpush1.msra.mxu0 0.0
        %925 = vmatprep.subr.mxu0 0.0
        %926 = vmatpush1.msra.mxu0 0.0
        %927 = vmatprep.subr.mxu0 0.0
        %928 = vmatpush1.msra.mxu0 0.0
        %929 = vmatprep.subr.mxu0 0.0
        %930 = vmatpush1.msra.mxu0 0.0
        %931 = vmatprep.subr.mxu0 0.0
        %932 = vmatpush1.msra.mxu0 0.0
        %933 = vmatprep.subr.mxu0 0.0
        %934 = vmatpush1.msra.mxu0 0.0
        %935 = vmatprep.subr.mxu0 0.0
        %936 = vmatpush1.msra.mxu0 0.0
        %937 = vmatprep.mubr.f32.mxu0 0.0
        %938 = vmatmul.mubr.f32.gmra.mrb[0].mxu0 %v871
        %v939 = vpop.f32.mrb[0].mxu0
        %v940 = vadd.f32 0.0, %v939
        %v941 = vpop.f32.mrb[0].mxu0
        %v942 = vadd.f32 0.0, %v941
        %943 = vdwg.mxu0
        %945 = vset.pattern.permute.xlu0 0
        %946 = vperm.xlu0 %945, %v584
        %v947 = vpop.permute.xlu0 %946
        %950 = vset.pattern.permute.xlu0 0
        %951 = vperm.xlu0 %950, %v585
        %v952 = vpop.permute.xlu0 %951
        %v954 = vlaneseq
        %v955 = vshrl.u32 %v954, 7
        %v956 = vsub.s32 0, %v955
        %v957 = vrot.slane %v940, %v956
        %v958 = vlaneseq
        %v959 = vshrl.u32 %v958, 7
        %v960 = vsub.s32 0, %v959
        %v961 = vrot.slane %v942, %v960
        %v962 = vmul.f32 %v947, %v957
        %v963 = vmul.f32 %v947, %v961
        %v964 = vmul.f32 %v952, %v957
        %v965 = vmul.f32 %v952, %v961
        %966 = vset.pattern.permute.xlu0 1
        %967 = vperm.xlu0 %966, %v584
        %v968 = vpop.permute.xlu0 %967
        %970 = vset.pattern.permute.xlu0 1
        %971 = vperm.xlu0 %970, %v585
        %v972 = vpop.permute.xlu0 %971
        %v974 = vlaneseq
        %v975 = vshrl.u32 %v974, 7
        %v976 = vsub.s32 1, %v975
        %v977 = vrot.slane %v940, %v976
        %v978 = vlaneseq
        %v979 = vshrl.u32 %v978, 7
        %v980 = vsub.s32 1, %v979
        %v981 = vrot.slane %v942, %v980
        %v982 = vmul.f32 %v968, %v977
        %v983 = vmul.f32 %v968, %v981
        %v984 = vmul.f32 %v972, %v977
        %v985 = vmul.f32 %v972, %v981
        %v986 = vadd.f32 %v962, %v982
        %v987 = vadd.f32 %v963, %v983
        %v988 = vadd.f32 %v964, %v984
        %v989 = vadd.f32 %v965, %v985
        %v990 = vmul.f32 %v867, 2.0
        %v991 = vmul.f32 %v867, %v867
        %v992 = vsub.f32 %v990, %v991
        %v993 = vmul.f32 %v986, %v986
        %v994 = vmul.f32 %v988, %v988
        %v996 = vlaneseq
        %v997 = vshrl.u32 %v996, 7
        %v998 = vsub.s32 0, %v997
        %v999 = vrot.slane %v992, %v998
        %v1001 = vmul.f32 %v999, %v993
        %v1002 = vmul.f32 %v999, %v994
        %v1003 = vsub.f32 %v987, %v1001
        %v1004 = vsub.f32 %v989, %v1002
        %v1006 = vlaneseq
        %v1007 = vshrl.u32 %v1006, 7
        %v1008 = vsub.s32 0, %v1007
        %v1009 = vrot.slane %v867, %v1008
        %v1011 = vmul.f32 %v1009, %v986
        %v1012 = vmul.f32 %v1009, %v988
        %v1013 = vsub.f32 %v861, %v1011
        %v1014 = vsub.f32 %v864, %v1012
        %v1015 = vld [vmem:[%s8] sm:$0x1]
        %v1017 = vlaneseq
        %v1018 = vshrl.u32 %v1017, 7
        %v1019 = vsub.s32 0, %v1018
        %v1020 = vrot.slane %v1015, %v1019
        %v1022 = vmul.f32 %v1020, %v1013
        %v1023 = vmul.f32 %v1020, %v1014
        %v1024 = vadd.f32 %v1003, 1e-05
        %v1025 = vadd.f32 %v1004, 1e-05
        %v1026 = vrsqrt.pop %v1024
        %v1027 = vrsqrt.pop %v1025
        %v1028 = vmul.f32 %v1022, %v1026
        %v1029 = vmul.f32 %v1023, %v1027
        %v1030 = vld [vmem:[%s9] sm:$0x1]
        %v1032 = vlaneseq
        %v1033 = vshrl.u32 %v1032, 7
        %v1034 = vsub.s32 0, %v1033
        %v1035 = vrot.slane %v1030, %v1034
        %v1037 = vadd.f32 %v1028, %v1035
        %v1038 = vadd.f32 %v1029, %v1035
        %v1039 = vmax.f32 %v1037, 0.0
        %v1040 = vmax.f32 %v1038, 0.0
        %v1041 = vpack.c.bf16 %v1040, %v1039
        %1042 = vmatprep.subr.bf16.mxu0 0
        %1043 = vmatpush1.bf16.msra.mxu0 %v1041
        %1044 = vmatprep.subr.bf16.mxu0 0
        %1045 = vmatpush1.bf16.msra.mxu0 0
        %1046 = vmatprep.subr.bf16.mxu0 0
        %1047 = vmatpush1.bf16.msra.mxu0 0
        %1048 = vmatprep.subr.bf16.mxu0 0
        %1049 = vmatpush1.bf16.msra.mxu0 0
        %1050 = vmatprep.subr.bf16.mxu0 0
        %1051 = vmatpush1.bf16.msra.mxu0 0
        %1052 = vmatprep.subr.bf16.mxu0 0
        %1053 = vmatpush1.bf16.msra.mxu0 0
        %1054 = vmatprep.subr.bf16.mxu0 0
        %1055 = vmatpush1.bf16.msra.mxu0 0
        %1056 = vmatprep.subr.bf16.mxu0 0
        %1057 = vmatpush1.bf16.msra.mxu0 0
        %1058 = vmatprep.subr.bf16.mxu0 0
        %1059 = vmatpush1.bf16.msra.mxu0 0
        %1060 = vmatprep.subr.bf16.mxu0 0
        %1061 = vmatpush1.bf16.msra.mxu0 0
        %1062 = vmatprep.subr.bf16.mxu0 0
        %1063 = vmatpush1.bf16.msra.mxu0 0
        %1064 = vmatprep.subr.bf16.mxu0 0
        %1065 = vmatpush1.bf16.msra.mxu0 0
        %1066 = vmatprep.subr.bf16.mxu0 0
        %1067 = vmatpush1.bf16.msra.mxu0 0
        %1068 = vmatprep.subr.bf16.mxu0 0
        %1069 = vmatpush1.bf16.msra.mxu0 0
        %1070 = vmatprep.subr.bf16.mxu0 0
        %1071 = vmatpush1.bf16.msra.mxu0 0
        %1072 = vmatprep.subr.bf16.mxu0 0
        %1073 = vmatpush1.bf16.msra.mxu0 0
        %1074 = vmatprep.mubr.bf16.mxu0 0
        %1075 = vmatmul.mubr.bf16.gmra.mrb[0].mxu0 %v596
        %v1076 = vpop.f32.mrb[0].mxu0
        %v1077 = vadd.f32 0.0, %v1076
        %v1078 = vpop.f32.mrb[0].mxu0
        %v1079 = vpop.f32.mrb[0].mxu0
        %v1080 = vadd.f32 0.0, %v1079
        %v1081 = vpop.f32.mrb[0].mxu0
        %1082 = vdwg.mxu0
        %v1083 = vpack.c.bf16 %v1080, %v1077
        %s1084 = scalar_lea.vmem %s4, 64
        %v1085 = vld [vmem:[%s1084] sm:$0xf]
        %v1086 = vld [vmem:[%s1084 + $0x4] sm:$0xf]
        %v1087 = vld [vmem:[%s1084 + $0x8] sm:$0xf]
        %v1088 = vld [vmem:[%s1084 + $0xc] sm:$0xf]
        %v1089 = vld [vmem:[%s1084 + $0x10] sm:$0xf]
        %v1090 = vld [vmem:[%s1084 + $0x14] sm:$0xf]
        %v1091 = vld [vmem:[%s1084 + $0x18] sm:$0xf]
        %v1092 = vld [vmem:[%s1084 + $0x1c] sm:$0xf]
        %v1093 = vld [vmem:[%s1084 + $0x20] sm:$0xf]
        %v1094 = vld [vmem:[%s1084 + $0x24] sm:$0xf]
        %v1095 = vld [vmem:[%s1084 + $0x28] sm:$0xf]
        %v1096 = vld [vmem:[%s1084 + $0x2c] sm:$0xf]
        %v1097 = vld [vmem:[%s1084 + $0x30] sm:$0xf]
        %v1098 = vld [vmem:[%s1084 + $0x34] sm:$0xf]
        %v1099 = vld [vmem:[%s1084 + $0x38] sm:$0xf]
        %v1100 = vld [vmem:[%s1084 + $0x3c] sm:$0xf]
        %s1101 = scalar_lea.vmem %s5, 1
        %v1102 = vld [vmem:[%s1101] sm:$0x1]
        %v1104 = vlaneseq
        %v1105 = vshrl.u32 %v1104, 7
        %v1106 = vsub.s32 0, %v1105
        %v1107 = vrot.slane %v1102, %v1106
        %v1125 = vunpack.c.l.b16 %v1085
        %v1126 = vunpack.c.l.b16 %v1086
        %v1127 = vunpack.c.l.b16 %v1087
        %v1128 = vunpack.c.l.b16 %v1088
        %v1129 = vunpack.c.l.b16 %v1089
        %v1130 = vunpack.c.l.b16 %v1090
        %v1131 = vunpack.c.l.b16 %v1091
        %v1132 = vunpack.c.l.b16 %v1092
        %v1133 = vunpack.c.l.b16 %v1093
        %v1134 = vunpack.c.l.b16 %v1094
        %v1135 = vunpack.c.l.b16 %v1095
        %v1136 = vunpack.c.l.b16 %v1096
        %v1137 = vunpack.c.l.b16 %v1097
        %v1138 = vunpack.c.l.b16 %v1098
        %v1139 = vunpack.c.l.b16 %v1099
        %v1140 = vunpack.c.l.b16 %v1100
        %v1141 = vpack.c.b16 %v1126, %v1125
        %v1142 = vpack.c.b16 %v1128, %v1127
        %v1143 = vpack.c.b16 %v1130, %v1129
        %v1144 = vpack.c.b16 %v1132, %v1131
        %v1145 = vpack.c.b16 %v1134, %v1133
        %v1146 = vpack.c.b16 %v1136, %v1135
        %v1147 = vpack.c.b16 %v1138, %v1137
        %v1148 = vpack.c.b16 %v1140, %v1139
        %1157 = vmatprep.subr.bf16.mxu0 0
        %1158 = vmatpush1.bf16.msra.mxu0 %v1141
        %1159 = vmatprep.subr.bf16.mxu0 0
        %1160 = vmatpush1.bf16.msra.mxu0 %v1142
        %1161 = vmatprep.subr.bf16.mxu0 0
        %1162 = vmatpush1.bf16.msra.mxu0 %v1143
        %1163 = vmatprep.subr.bf16.mxu0 0
        %1164 = vmatpush1.bf16.msra.mxu0 %v1144
        %1165 = vmatprep.subr.bf16.mxu0 0
        %1166 = vmatpush1.bf16.msra.mxu0 %v1145
        %1167 = vmatprep.subr.bf16.mxu0 0
        %1168 = vmatpush1.bf16.msra.mxu0 %v1146
        %1169 = vmatprep.subr.bf16.mxu0 0
        %1170 = vmatpush1.bf16.msra.mxu0 %v1147
        %1171 = vmatprep.subr.bf16.mxu0 0
        %1172 = vmatpush1.bf16.msra.mxu0 %v1148
        %1173 = vmatprep.subr.bf16.mxu0 0
        %1174 = vmatpush1.bf16.msra.mxu0 0
        %1175 = vmatprep.subr.bf16.mxu0 0
        %1176 = vmatpush1.bf16.msra.mxu0 0
        %1177 = vmatprep.subr.bf16.mxu0 0
        %1178 = vmatpush1.bf16.msra.mxu0 0
        %1179 = vmatprep.subr.bf16.mxu0 0
        %1180 = vmatpush1.bf16.msra.mxu0 0
        %1181 = vmatprep.subr.bf16.mxu0 0
        %1182 = vmatpush1.bf16.msra.mxu0 0
        %1183 = vmatprep.subr.bf16.mxu0 0
        %1184 = vmatpush1.bf16.msra.mxu0 0
        %1185 = vmatprep.subr.bf16.mxu0 0
        %1186 = vmatpush1.bf16.msra.mxu0 0
        %1187 = vmatprep.subr.bf16.mxu0 0
        %1188 = vmatpush1.bf16.msra.mxu0 0
        %1189 = vmatprep.mubr.bf16.mxu0 0
        %1190 = vmatmul.mubr.bf16.gmra.mrb[0].mxu0 %v1083
        %v1191 = vpop.f32.mrb[0].mxu0
        %v1192 = vadd.f32 %v1107, %v1191
        %v1193 = vpop.f32.mrb[0].mxu0
        %v1194 = vpop.f32.mrb[0].mxu0
        %v1195 = vadd.f32 %v1107, %v1194
        %v1196 = vpop.f32.mrb[0].mxu0
        %1197 = vdwg.mxu0
        %v1198 = vmax.f32 %v1192, 0.0
        %v1199 = vmax.f32 %v1195, 0.0
        %v1200 = vpack.c.bf16 %v1199, %v1198
        %s1201 = scalar_lea.vmem %s6, 64
        %v1202 = vld [vmem:[%s1201] sm:$0xf]
        %v1203 = vld [vmem:[%s1201 + $0x4] sm:$0xf]
        %v1204 = vld [vmem:[%s1201 + $0x8] sm:$0xf]
        %v1205 = vld [vmem:[%s1201 + $0xc] sm:$0xf]
        %v1206 = vld [vmem:[%s1201 + $0x10] sm:$0xf]
        %v1207 = vld [vmem:[%s1201 + $0x14] sm:$0xf]
        %v1208 = vld [vmem:[%s1201 + $0x18] sm:$0xf]
        %v1209 = vld [vmem:[%s1201 + $0x1c] sm:$0xf]
        %v1210 = vld [vmem:[%s1201 + $0x20] sm:$0xf]
        %v1211 = vld [vmem:[%s1201 + $0x24] sm:$0xf]
        %v1212 = vld [vmem:[%s1201 + $0x28] sm:$0xf]
        %v1213 = vld [vmem:[%s1201 + $0x2c] sm:$0xf]
        %v1214 = vld [vmem:[%s1201 + $0x30] sm:$0xf]
        %v1215 = vld [vmem:[%s1201 + $0x34] sm:$0xf]
        %v1216 = vld [vmem:[%s1201 + $0x38] sm:$0xf]
        %v1217 = vld [vmem:[%s1201 + $0x3c] sm:$0xf]
        %s1218 = scalar_lea.vmem %s7, 1
        %v1219 = vld [vmem:[%s1218] sm:$0x1]
        %v1221 = vlaneseq
        %v1222 = vshrl.u32 %v1221, 7
        %v1223 = vsub.s32 0, %v1222
        %v1224 = vrot.slane %v1219, %v1223
        %v1242 = vunpack.c.l.b16 %v1202
        %v1243 = vunpack.c.l.b16 %v1203
        %v1244 = vunpack.c.l.b16 %v1204
        %v1245 = vunpack.c.l.b16 %v1205
        %v1246 = vunpack.c.l.b16 %v1206
        %v1247 = vunpack.c.l.b16 %v1207
        %v1248 = vunpack.c.l.b16 %v1208
        %v1249 = vunpack.c.l.b16 %v1209
        %v1250 = vunpack.c.l.b16 %v1210
        %v1251 = vunpack.c.l.b16 %v1211
        %v1252 = vunpack.c.l.b16 %v1212
        %v1253 = vunpack.c.l.b16 %v1213
        %v1254 = vunpack.c.l.b16 %v1214
        %v1255 = vunpack.c.l.b16 %v1215
        %v1256 = vunpack.c.l.b16 %v1216
        %v1257 = vunpack.c.l.b16 %v1217
        %v1258 = vpack.c.b16 %v1243, %v1242
        %v1259 = vpack.c.b16 %v1245, %v1244
        %v1260 = vpack.c.b16 %v1247, %v1246
        %v1261 = vpack.c.b16 %v1249, %v1248
        %v1262 = vpack.c.b16 %v1251, %v1250
        %v1263 = vpack.c.b16 %v1253, %v1252
        %v1264 = vpack.c.b16 %v1255, %v1254
        %v1265 = vpack.c.b16 %v1257, %v1256
        %1274 = vmatprep.subr.bf16.mxu0 0
        %1275 = vmatpush1.bf16.msra.mxu0 %v1258
        %1276 = vmatprep.subr.bf16.mxu0 0
        %1277 = vmatpush1.bf16.msra.mxu0 %v1259
        %1278 = vmatprep.subr.bf16.mxu0 0
        %1279 = vmatpush1.bf16.msra.mxu0 %v1260
        %1280 = vmatprep.subr.bf16.mxu0 0
        %1281 = vmatpush1.bf16.msra.mxu0 %v1261
        %1282 = vmatprep.subr.bf16.mxu0 0
        %1283 = vmatpush1.bf16.msra.mxu0 %v1262
        %1284 = vmatprep.subr.bf16.mxu0 0
        %1285 = vmatpush1.bf16.msra.mxu0 %v1263
        %1286 = vmatprep.subr.bf16.mxu0 0
        %1287 = vmatpush1.bf16.msra.mxu0 %v1264
        %1288 = vmatprep.subr.bf16.mxu0 0
        %1289 = vmatpush1.bf16.msra.mxu0 %v1265
        %1290 = vmatprep.subr.bf16.mxu0 0
        %1291 = vmatpush1.bf16.msra.mxu0 0
        %1292 = vmatprep.subr.bf16.mxu0 0
        %1293 = vmatpush1.bf16.msra.mxu0 0
        %1294 = vmatprep.subr.bf16.mxu0 0
        %1295 = vmatpush1.bf16.msra.mxu0 0
        %1296 = vmatprep.subr.bf16.mxu0 0
        %1297 = vmatpush1.bf16.msra.mxu0 0
        %1298 = vmatprep.subr.bf16.mxu0 0
        %1299 = vmatpush1.bf16.msra.mxu0 0
        %1300 = vmatprep.subr.bf16.mxu0 0
        %1301 = vmatpush1.bf16.msra.mxu0 0
        %1302 = vmatprep.subr.bf16.mxu0 0
        %1303 = vmatpush1.bf16.msra.mxu0 0
        %1304 = vmatprep.subr.bf16.mxu0 0
        %1305 = vmatpush1.bf16.msra.mxu0 0
        %1306 = vmatprep.mubr.bf16.mxu0 0
        %1307 = vmatmul.mubr.bf16.gmra.mrb[0].mxu0 %v1200
        %v1308 = vpop.f32.mrb[0].mxu0
        %v1309 = vadd.f32 %v1224, %v1308
        %v1310 = vpop.f32.mrb[0].mxu0
        %v1311 = vpop.f32.mrb[0].mxu0
        %v1312 = vadd.f32 %v1224, %v1311
        %v1313 = vpop.f32.mrb[0].mxu0
        %1314 = vdwg.mxu0
        %s1315 = scalar_lea.vmem %s10, 1
        %v1316 = vld [vmem:[%s1315] sm:$0x1]
        %v1317 = vmul.f32 %v1309, %v1309
        %v1318 = vmul.f32 %v1312, %v1312
        %1319 = vmatprep.subr.mxu0 %v1317
        %1320 = vmatpush1.msra.mxu0 %v1309
        %1321 = vmatprep.subr.mxu0 %v1318
        %1322 = vmatpush1.msra.mxu0 %v1312
        %1323 = vmatprep.subr.mxu0 0.0
        %1324 = vmatpush1.msra.mxu0 0.0
        %1325 = vmatprep.subr.mxu0 0.0
        %1326 = vmatpush1.msra.mxu0 0.0
        %1327 = vmatprep.subr.mxu0 0.0
        %1328 = vmatpush1.msra.mxu0 0.0
        %1329 = vmatprep.subr.mxu0 0.0
        %1330 = vmatpush1.msra.mxu0 0.0
        %1331 = vmatprep.subr.mxu0 0.0
        %1332 = vmatpush1.msra.mxu0 0.0
        %1333 = vmatprep.subr.mxu0 0.0
        %1334 = vmatpush1.msra.mxu0 0.0
        %1335 = vmatprep.subr.mxu0 0.0
        %1336 = vmatpush1.msra.mxu0 0.0
        %1337 = vmatprep.subr.mxu0 0.0
        %1338 = vmatpush1.msra.mxu0 0.0
        %1339 = vmatprep.subr.mxu0 0.0
        %1340 = vmatpush1.msra.mxu0 0.0
        %1341 = vmatprep.subr.mxu0 0.0
        %1342 = vmatpush1.msra.mxu0 0.0
        %1343 = vmatprep.subr.mxu0 0.0
        %1344 = vmatpush1.msra.mxu0 0.0
        %1345 = vmatprep.subr.mxu0 0.0
        %1346 = vmatpush1.msra.mxu0 0.0
        %1347 = vmatprep.subr.mxu0 0.0
        %1348 = vmatpush1.msra.mxu0 0.0
        %1349 = vmatprep.subr.mxu0 0.0
        %1350 = vmatpush1.msra.mxu0 0.0
        %1351 = vmatprep.subr.mxu0 0.0
        %1352 = vmatpush1.msra.mxu0 0.0
        %1353 = vmatprep.subr.mxu0 0.0
        %1354 = vmatpush1.msra.mxu0 0.0
        %1355 = vmatprep.subr.mxu0 0.0
        %1356 = vmatpush1.msra.mxu0 0.0
        %1357 = vmatprep.subr.mxu0 0.0
        %1358 = vmatpush1.msra.mxu0 0.0
        %1359 = vmatprep.subr.mxu0 0.0
        %1360 = vmatpush1.msra.mxu0 0.0
        %1361 = vmatprep.subr.mxu0 0.0
        %1362 = vmatpush1.msra.mxu0 0.0
        %1363 = vmatprep.subr.mxu0 0.0
        %1364 = vmatpush1.msra.mxu0 0.0
        %1365 = vmatprep.subr.mxu0 0.0
        %1366 = vmatpush1.msra.mxu0 0.0
        %1367 = vmatprep.subr.mxu0 0.0
        %1368 = vmatpush1.msra.mxu0 0.0
        %1369 = vmatprep.subr.mxu0 0.0
        %1370 = vmatpush1.msra.mxu0 0.0
        %1371 = vmatprep.subr.mxu0 0.0
        %1372 = vmatpush1.msra.mxu0 0.0
        %1373 = vmatprep.subr.mxu0 0.0
        %1374 = vmatpush1.msra.mxu0 0.0
        %1375 = vmatprep.subr.mxu0 0.0
        %1376 = vmatpush1.msra.mxu0 0.0
        %1377 = vmatprep.subr.mxu0 0.0
        %1378 = vmatpush1.msra.mxu0 0.0
        %1379 = vmatprep.subr.mxu0 0.0
        %1380 = vmatpush1.msra.mxu0 0.0
        %1381 = vmatprep.subr.mxu0 0.0
        %1382 = vmatpush1.msra.mxu0 0.0
        %1383 = vmatprep.mubr.f32.mxu0 0.0
        %1384 = vmatmul.mubr.f32.gmra.mrb[0].mxu0 %v871
        %v1385 = vpop.f32.mrb[0].mxu0
        %v1386 = vadd.f32 0.0, %v1385
        %v1387 = vpop.f32.mrb[0].mxu0
        %v1388 = vadd.f32 0.0, %v1387
        %1389 = vdwg.mxu0
        %v1390 = vlaneseq
        %v1391 = vshrl.u32 %v1390, 7
        %v1392 = vsub.s32 0, %v1391
        %v1393 = vrot.slane %v1386, %v1392
        %v1394 = vlaneseq
        %v1395 = vshrl.u32 %v1394, 7
        %v1396 = vsub.s32 0, %v1395
        %v1397 = vrot.slane %v1388, %v1396
        %v1398 = vmul.f32 %v947, %v1393
        %v1399 = vmul.f32 %v947, %v1397
        %v1400 = vmul.f32 %v952, %v1393
        %v1401 = vmul.f32 %v952, %v1397
        %v1402 = vlaneseq
        %v1403 = vshrl.u32 %v1402, 7
        %v1404 = vsub.s32 1, %v1403
        %v1405 = vrot.slane %v1386, %v1404
        %v1406 = vlaneseq
        %v1407 = vshrl.u32 %v1406, 7
        %v1408 = vsub.s32 1, %v1407
        %v1409 = vrot.slane %v1388, %v1408
        %v1410 = vmul.f32 %v968, %v1405
        %v1411 = vmul.f32 %v968, %v1409
        %v1412 = vmul.f32 %v972, %v1405
        %v1413 = vmul.f32 %v972, %v1409
        %v1414 = vadd.f32 %v1398, %v1410
        %v1415 = vadd.f32 %v1399, %v1411
        %v1416 = vadd.f32 %v1400, %v1412
        %v1417 = vadd.f32 %v1401, %v1413
        %v1418 = vmul.f32 %v1316, 2.0
        %v1419 = vmul.f32 %v1316, %v1316
        %v1420 = vsub.f32 %v1418, %v1419
        %v1421 = vmul.f32 %v1414, %v1414
        %v1422 = vmul.f32 %v1416, %v1416
        %v1424 = vlaneseq
        %v1425 = vshrl.u32 %v1424, 7
        %v1426 = vsub.s32 0, %v1425
        %v1427 = vrot.slane %v1420, %v1426
        %v1429 = vmul.f32 %v1427, %v1421
        %v1430 = vmul.f32 %v1427, %v1422
        %v1431 = vsub.f32 %v1415, %v1429
        %v1432 = vsub.f32 %v1417, %v1430
        %v1434 = vlaneseq
        %v1435 = vshrl.u32 %v1434, 7
        %v1436 = vsub.s32 0, %v1435
        %v1437 = vrot.slane %v1316, %v1436
        %v1439 = vmul.f32 %v1437, %v1414
        %v1440 = vmul.f32 %v1437, %v1416
        %v1441 = vsub.f32 %v1309, %v1439
        %v1442 = vsub.f32 %v1312, %v1440
        %s1443 = scalar_lea.vmem %s8, 1
        %v1444 = vld [vmem:[%s1443] sm:$0x1]
        %v1446 = vlaneseq
        %v1447 = vshrl.u32 %v1446, 7
        %v1448 = vsub.s32 0, %v1447
        %v1449 = vrot.slane %v1444, %v1448
        %v1451 = vmul.f32 %v1449, %v1441
        %v1452 = vmul.f32 %v1449, %v1442
        %v1453 = vadd.f32 %v1431, 1e-05
        %v1454 = vadd.f32 %v1432, 1e-05
        %v1455 = vrsqrt.pop %v1453
        %v1456 = vrsqrt.pop %v1454
        %v1457 = vmul.f32 %v1451, %v1455
        %v1458 = vmul.f32 %v1452, %v1456
        %s1459 = scalar_lea.vmem %s9, 1
        %v1460 = vld [vmem:[%s1459] sm:$0x1]
        %v1462 = vlaneseq
        %v1463 = vshrl.u32 %v1462, 7
        %v1464 = vsub.s32 0, %v1463
        %v1465 = vrot.slane %v1460, %v1464
        %v1467 = vadd.f32 %v1457, %v1465
        %v1468 = vadd.f32 %v1458, %v1465
        %v1469 = vmax.f32 %v1467, 0.0
        %v1470 = vmax.f32 %v1468, 0.0
        %1471 = vmatprep.subr.mxu0 0.0
        %1472 = vmatpush1.msra.mxu0 %v1469
        %1473 = vmatprep.subr.mxu0 0.0
        %1474 = vmatpush1.msra.mxu0 %v1470
        %1475 = vmatprep.subr.mxu0 0.0
        %1476 = vmatpush1.msra.mxu0 0.0
        %1477 = vmatprep.subr.mxu0 0.0
        %1478 = vmatpush1.msra.mxu0 0.0
        %1479 = vmatprep.subr.mxu0 0.0
        %1480 = vmatpush1.msra.mxu0 0.0
        %1481 = vmatprep.subr.mxu0 0.0
        %1482 = vmatpush1.msra.mxu0 0.0
        %1483 = vmatprep.subr.mxu0 0.0
        %1484 = vmatpush1.msra.mxu0 0.0
        %1485 = vmatprep.subr.mxu0 0.0
        %1486 = vmatpush1.msra.mxu0 0.0
        %1487 = vmatprep.subr.mxu0 0.0
        %1488 = vmatpush1.msra.mxu0 0.0
        %1489 = vmatprep.subr.mxu0 0.0
        %1490 = vmatpush1.msra.mxu0 0.0
        %1491 = vmatprep.subr.mxu0 0.0
        %1492 = vmatpush1.msra.mxu0 0.0
        %1493 = vmatprep.subr.mxu0 0.0
        %1494 = vmatpush1.msra.mxu0 0.0
        %1495 = vmatprep.subr.mxu0 0.0
        %1496 = vmatpush1.msra.mxu0 0.0
        %1497 = vmatprep.subr.mxu0 0.0
        %1498 = vmatpush1.msra.mxu0 0.0
        %1499 = vmatprep.subr.mxu0 0.0
        %1500 = vmatpush1.msra.mxu0 0.0
        %1501 = vmatprep.subr.mxu0 0.0
        %1502 = vmatpush1.msra.mxu0 0.0
        %1503 = vmatprep.subr.mxu0 0.0
        %1504 = vmatpush1.msra.mxu0 0.0
        %1505 = vmatprep.subr.mxu0 0.0
        %1506 = vmatpush1.msra.mxu0 0.0
        %1507 = vmatprep.subr.mxu0 0.0
        %1508 = vmatpush1.msra.mxu0 0.0
        %1509 = vmatprep.subr.mxu0 0.0
        %1510 = vmatpush1.msra.mxu0 0.0
        %1511 = vmatprep.subr.mxu0 0.0
        %1512 = vmatpush1.msra.mxu0 0.0
        %1513 = vmatprep.subr.mxu0 0.0
        %1514 = vmatpush1.msra.mxu0 0.0
        %1515 = vmatprep.subr.mxu0 0.0
        %1516 = vmatpush1.msra.mxu0 0.0
        %1517 = vmatprep.subr.mxu0 0.0
        %1518 = vmatpush1.msra.mxu0 0.0
        %1519 = vmatprep.subr.mxu0 0.0
        %1520 = vmatpush1.msra.mxu0 0.0
        %1521 = vmatprep.subr.mxu0 0.0
        %1522 = vmatpush1.msra.mxu0 0.0
        %1523 = vmatprep.subr.mxu0 0.0
        %1524 = vmatpush1.msra.mxu0 0.0
        %1525 = vmatprep.subr.mxu0 0.0
        %1526 = vmatpush1.msra.mxu0 0.0
        %1527 = vmatprep.subr.mxu0 0.0
        %1528 = vmatpush1.msra.mxu0 0.0
        %1529 = vmatprep.subr.mxu0 0.0
        %1530 = vmatpush1.msra.mxu0 0.0
        %1531 = vmatprep.subr.mxu0 0.0
        %1532 = vmatpush1.msra.mxu0 0.0
        %1533 = vmatprep.subr.mxu0 0.0
        %1534 = vmatpush1.msra.mxu0 0.0
        %1535 = vmatprep.mubr.f32.mxu0 0.0
        %1536 = vmatmul.mubr.f32.gmra.mrb[0].mxu0 %v871
        %v1537 = vpop.f32.mrb[0].mxu0
        %v1538 = vadd.f32 0.0, %v1537
        %v1539 = vpop.f32.mrb[0].mxu0
        %1540 = vdwg.mxu0
        %v1541 = vpack.c.bf16 %v1538, %v1538
        %v1542 = vld [vmem:[#allocation2] sm:$0xf]
        %v1543 = vld [vmem:[#allocation2 + $0x4] sm:$0xf]
        %v1544 = vld [vmem:[#allocation2 + $0x8] sm:$0xf]
        %v1545 = vld [vmem:[#allocation2 + $0xc] sm:$0xf]
        %v1546 = vld [vmem:[#allocation2 + $0x10] sm:$0xf]
        %v1547 = vld [vmem:[#allocation2 + $0x14] sm:$0xf]
        %v1548 = vld [vmem:[#allocation2 + $0x18] sm:$0xf]
        %v1549 = vld [vmem:[#allocation2 + $0x1c] sm:$0xf]
        %v1550 = vld [vmem:[#allocation2 + $0x20] sm:$0xf]
        %v1551 = vld [vmem:[#allocation2 + $0x24] sm:$0xf]
        %v1552 = vld [vmem:[#allocation2 + $0x28] sm:$0xf]
        %v1553 = vld [vmem:[#allocation2 + $0x2c] sm:$0xf]
        %v1554 = vld [vmem:[#allocation2 + $0x30] sm:$0xf]
        %v1555 = vld [vmem:[#allocation2 + $0x34] sm:$0xf]
        %v1556 = vld [vmem:[#allocation2 + $0x38] sm:$0xf]
        %v1557 = vld [vmem:[#allocation2 + $0x3c] sm:$0xf]
        %v1558 = vld [vmem:[%s12] sm:$0x1]
        %v1560 = vlaneseq
        %v1561 = vshrl.u32 %v1560, 7
        %v1562 = vsub.s32 0, %v1561
        %v1563 = vrot.slane %v1558, %v1562
        %v1581 = vunpack.c.l.b16 %v1542
        %v1582 = vunpack.c.l.b16 %v1543
        %v1583 = vunpack.c.l.b16 %v1544
        %v1584 = vunpack.c.l.b16 %v1545
        %v1585 = vunpack.c.l.b16 %v1546
        %v1586 = vunpack.c.l.b16 %v1547
        %v1587 = vunpack.c.l.b16 %v1548
        %v1588 = vunpack.c.l.b16 %v1549
        %v1589 = vunpack.c.l.b16 %v1550
        %v1590 = vunpack.c.l.b16 %v1551
        %v1591 = vunpack.c.l.b16 %v1552
        %v1592 = vunpack.c.l.b16 %v1553
        %v1593 = vunpack.c.l.b16 %v1554
        %v1594 = vunpack.c.l.b16 %v1555
        %v1595 = vunpack.c.l.b16 %v1556
        %v1596 = vunpack.c.l.b16 %v1557
        %v1597 = vpack.c.b16 %v1582, %v1581
        %v1598 = vpack.c.b16 %v1584, %v1583
        %v1599 = vpack.c.b16 %v1586, %v1585
        %v1600 = vpack.c.b16 %v1588, %v1587
        %v1601 = vpack.c.b16 %v1590, %v1589
        %v1602 = vpack.c.b16 %v1592, %v1591
        %v1603 = vpack.c.b16 %v1594, %v1593
        %v1604 = vpack.c.b16 %v1596, %v1595
        %1613 = vmatprep.subr.bf16.mxu0 0
        %1614 = vmatpush1.bf16.msra.mxu0 %v1597
        %1615 = vmatprep.subr.bf16.mxu0 0
        %1616 = vmatpush1.bf16.msra.mxu0 %v1598
        %1617 = vmatprep.subr.bf16.mxu0 0
        %1618 = vmatpush1.bf16.msra.mxu0 %v1599
        %1619 = vmatprep.subr.bf16.mxu0 0
        %1620 = vmatpush1.bf16.msra.mxu0 %v1600
        %1621 = vmatprep.subr.bf16.mxu0 0
        %1622 = vmatpush1.bf16.msra.mxu0 %v1601
        %1623 = vmatprep.subr.bf16.mxu0 0
        %1624 = vmatpush1.bf16.msra.mxu0 %v1602
        %1625 = vmatprep.subr.bf16.mxu0 0
        %1626 = vmatpush1.bf16.msra.mxu0 %v1603
        %1627 = vmatprep.subr.bf16.mxu0 0
        %1628 = vmatpush1.bf16.msra.mxu0 %v1604
        %1629 = vmatprep.subr.bf16.mxu0 0
        %1630 = vmatpush1.bf16.msra.mxu0 0
        %1631 = vmatprep.subr.bf16.mxu0 0
        %1632 = vmatpush1.bf16.msra.mxu0 0
        %1633 = vmatprep.subr.bf16.mxu0 0
        %1634 = vmatpush1.bf16.msra.mxu0 0
        %1635 = vmatprep.subr.bf16.mxu0 0
        %1636 = vmatpush1.bf16.msra.mxu0 0
        %1637 = vmatprep.subr.bf16.mxu0 0
        %1638 = vmatpush1.bf16.msra.mxu0 0
        %1639 = vmatprep.subr.bf16.mxu0 0
        %1640 = vmatpush1.bf16.msra.mxu0 0
        %1641 = vmatprep.subr.bf16.mxu0 0
        %1642 = vmatpush1.bf16.msra.mxu0 0
        %1643 = vmatprep.subr.bf16.mxu0 0
        %1644 = vmatpush1.bf16.msra.mxu0 0
        %1645 = vmatprep.mubr.bf16.mxu0 0
        %1646 = vmatmul.mubr.bf16.gmra.mrb[0].mxu0 %v1541
        %v1647 = vpop.f32.mrb[0].mxu0
        %v1648 = vadd.f32 %v1563, %v1647
        %v1649 = vpop.f32.mrb[0].mxu0
        %v1650 = vpop.f32.mrb[0].mxu0
        %v1651 = vpop.f32.mrb[0].mxu0
        %1652 = vdwg.mxu0
        %v1653 = vmax.f32 %v1648, 0.0
        %v1654 = vpack.c.bf16 %v1653, %v1653
        %v1655 = vld [vmem:[#allocation5] sm:$0xf]
        %v1656 = vld [vmem:[#allocation5 + $0x4] sm:$0xf]
        %v1657 = vld [vmem:[#allocation5 + $0x8] sm:$0xf]
        %v1658 = vld [vmem:[#allocation5 + $0xc] sm:$0xf]
        %v1659 = vld [vmem:[#allocation5 + $0x10] sm:$0xf]
        %v1660 = vld [vmem:[#allocation5 + $0x14] sm:$0xf]
        %v1661 = vld [vmem:[#allocation5 + $0x18] sm:$0xf]
        %v1662 = vld [vmem:[#allocation5 + $0x1c] sm:$0xf]
        %v1663 = vld [vmem:[#allocation5 + $0x20] sm:$0xf]
        %v1664 = vld [vmem:[#allocation5 + $0x24] sm:$0xf]
        %v1665 = vld [vmem:[#allocation5 + $0x28] sm:$0xf]
        %v1666 = vld [vmem:[#allocation5 + $0x2c] sm:$0xf]
        %v1667 = vld [vmem:[#allocation5 + $0x30] sm:$0xf]
        %v1668 = vld [vmem:[#allocation5 + $0x34] sm:$0xf]
        %v1669 = vld [vmem:[#allocation5 + $0x38] sm:$0xf]
        %v1670 = vld [vmem:[#allocation5 + $0x3c] sm:$0xf]
        %v1671 = vld [vmem:[%s14] sm:$0x1]
        %v1673 = vlaneseq
        %v1674 = vshrl.u32 %v1673, 7
        %v1675 = vsub.s32 0, %v1674
        %v1676 = vrot.slane %v1671, %v1675
        %v1694 = vunpack.c.l.b16 %v1655
        %v1695 = vunpack.c.l.b16 %v1656
        %v1696 = vunpack.c.l.b16 %v1657
        %v1697 = vunpack.c.l.b16 %v1658
        %v1698 = vunpack.c.l.b16 %v1659
        %v1699 = vunpack.c.l.b16 %v1660
        %v1700 = vunpack.c.l.b16 %v1661
        %v1701 = vunpack.c.l.b16 %v1662
        %v1702 = vunpack.c.l.b16 %v1663
        %v1703 = vunpack.c.l.b16 %v1664
        %v1704 = vunpack.c.l.b16 %v1665
        %v1705 = vunpack.c.l.b16 %v1666
        %v1706 = vunpack.c.l.b16 %v1667
        %v1707 = vunpack.c.l.b16 %v1668
        %v1708 = vunpack.c.l.b16 %v1669
        %v1709 = vunpack.c.l.b16 %v1670
        %v1710 = vpack.c.b16 %v1695, %v1694
        %v1711 = vpack.c.b16 %v1697, %v1696
        %v1712 = vpack.c.b16 %v1699, %v1698
        %v1713 = vpack.c.b16 %v1701, %v1700
        %v1714 = vpack.c.b16 %v1703, %v1702
        %v1715 = vpack.c.b16 %v1705, %v1704
        %v1716 = vpack.c.b16 %v1707, %v1706
        %v1717 = vpack.c.b16 %v1709, %v1708
        %1726 = vmatprep.subr.bf16.mxu0 0
        %1727 = vmatpush1.bf16.msra.mxu0 %v1710
        %1728 = vmatprep.subr.bf16.mxu0 0
        %1729 = vmatpush1.bf16.msra.mxu0 %v1711
        %1730 = vmatprep.subr.bf16.mxu0 0
        %1731 = vmatpush1.bf16.msra.mxu0 %v1712
        %1732 = vmatprep.subr.bf16.mxu0 0
        %1733 = vmatpush1.bf16.msra.mxu0 %v1713
        %1734 = vmatprep.subr.bf16.mxu0 0
        %1735 = vmatpush1.bf16.msra.mxu0 %v1714
        %1736 = vmatprep.subr.bf16.mxu0 0
        %1737 = vmatpush1.bf16.msra.mxu0 %v1715
        %1738 = vmatprep.subr.bf16.mxu0 0
        %1739 = vmatpush1.bf16.msra.mxu0 %v1716
        %1740 = vmatprep.subr.bf16.mxu0 0
        %1741 = vmatpush1.bf16.msra.mxu0 %v1717
        %1742 = vmatprep.subr.bf16.mxu0 0
        %1743 = vmatpush1.bf16.msra.mxu0 0
        %1744 = vmatprep.subr.bf16.mxu0 0
        %1745 = vmatpush1.bf16.msra.mxu0 0
        %1746 = vmatprep.subr.bf16.mxu0 0
        %1747 = vmatpush1.bf16.msra.mxu0 0
        %1748 = vmatprep.subr.bf16.mxu0 0
        %1749 = vmatpush1.bf16.msra.mxu0 0
        %1750 = vmatprep.subr.bf16.mxu0 0
        %1751 = vmatpush1.bf16.msra.mxu0 0
        %1752 = vmatprep.subr.bf16.mxu0 0
        %1753 = vmatpush1.bf16.msra.mxu0 0
        %1754 = vmatprep.subr.bf16.mxu0 0
        %1755 = vmatpush1.bf16.msra.mxu0 0
        %1756 = vmatprep.subr.bf16.mxu0 0
        %1757 = vmatpush1.bf16.msra.mxu0 0
        %1758 = vmatprep.mubr.bf16.mxu0 0
        %1759 = vmatmul.mubr.bf16.gmra.mrb[0].mxu0 %v1654
        %v1760 = vpop.f32.mrb[0].mxu0
        %v1761 = vadd.f32 %v1676, %v1760
        %v1762 = vpop.f32.mrb[0].mxu0
        %v1763 = vpop.f32.mrb[0].mxu0
        %v1764 = vpop.f32.mrb[0].mxu0
        %1765 = vdwg.mxu0
        %1766 = vst [vmem:[%s560] sm:$0x3] %v1761
        %s1767 = sand.u32 %s374, 1
        %s1768 = scalar_lea.sflag [#allocation4], %s1767
        %s1769 = sand.u32 %s374, 1
        %s1770 = smul.addr %s1769, 2
        %s1771 = scalar_lea.vmem [#allocation7], %s1770
        // Predicated region
        $region89: #{forward.1} parent=79 // pred_check
          %p1772 = pneg %p384
        $region90: #{forward.1} parent=79 // pred_check_branch
          %1774 = sbr.rel (%p1772) target = $region92
        $region91: #{forward.1} parent=79 // pred_region
          %s1776 = ssub.s32 32, 32
          %1777 = vsyncadd %s1768, %s1776
          %s1778 = smul.addr %s31, 32
          %s1779 = scalar_lea.hbm %s15, %s1778
          %s1781 = sshll.u32 %s1771, 4
          %s1782 = int_to_ptr.vmem [resolvable:$true] %s1781
          %1784 = dma.vmem_to_hbm [thread:$0]  %s1782, 32, %s1779, %s1768
        $region92: #{forward.1} parent=79 // pred_fallthru
          _
      $region80: #{forward.1} parent=5 // pred_fallthru
        _
      %p1785 = scmp.le.s32.totalorder 2, %s26
      // Predicated region
      $region93: #{forward.1} parent=5 // pred_check
        %p1786 = pneg %p1785
      $region94: #{forward.1} parent=5 // pred_check_branch
        %1788 = sbr.rel (%p1786) target = $region96
      $region95: #{forward.1} parent=5 // pred_region
        %s1789 = ssub.s32 %s26, 2
        // Predicated region
        $region97: #{forward.1} parent=95 // pred_check
          %p1790 = pneg %p390
        $region98: #{forward.1} parent=95 // pred_check_branch
          %1792 = sbr.rel (%p1790) target = $region100
        $region99: #{forward.1} parent=95 // pred_region
          %s1793 = sand.u32 %s375, 1
          %s1794 = scalar_lea.sflag [#allocation4], %s1793
          %s1795 = sand.u32 %s375, 1
          %s1796 = smul.addr %s1795, 2
          %s1797 = scalar_lea.vmem [#allocation7], %s1796
          %1798 = dma.done %s1794, 32
        $region100: #{forward.1} parent=95 // pred_fallthru
          _
      $region96: #{forward.1} parent=5 // pred_fallthru
        _
    $region6: #{forward.1} parent=1 // loop_footer
      %s30 = sadd.s32 1, %s26
    $region7: #{forward.1} parent=1 // loop_footer_branch
      %25 = sbr.rel target = $region3
    $region8: #{forward.1} parent=1 // loop_exit
      _
    %1799 = vsyncpa [#allocation3], 1
    %s1800 = scalar_lea.sflag [#allocation3], 1
    %1801 = vsyncpa %s1800, 1
    %1802 = vsyncpa [#allocation6], 1
    %1803 = vsyncpa [#allocation4], 1
    %s1804 = scalar_lea.sflag [#allocation4], 1
    %1805 = vsyncpa %s1804, 1

</llo_original>
